<compile_context>
chip_gen: v7x
topology: tpu7x:2x2x1
jax: 0.10.0
libtpu: 0.0.40
codegen_flags: <defaults>
</compile_context>

<pallas_src>
import math
import functools

import jax
import jax.numpy as jnp
from jax import lax
from jax.experimental import pallas as pl
from jax.experimental.pallas import tpu as pltpu


# ----------------------------------------------------------------------------
# Fused multi-head-attention kernel
# ----------------------------------------------------------------------------

def _mha_kernel(q_ref, k_ref, v_ref, bias_ref,
                wq_ref, wk_ref, wv_ref, wo_ref,
                o_ref,
                q_sc, k_sc, v_sc, m_sc, l_sc, acc_sc,
                *, num_heads, head_dim, scale):
    kv = pl.program_id(2)
    n_kv = pl.num_programs(2)

    # Start of the KV sweep for this (batch, q-tile): project Q once with the
    # full DxD weight (lane-dense N=D MXU work) and reset online-softmax state.
    @pl.when(kv == 0)
    def _():
        qf = jnp.dot(q_ref[0], wq_ref[...], preferred_element_type=jnp.float32)
        q_sc[...] = (qf * scale).astype(q_sc.dtype)
        m_sc[...] = jnp.full(m_sc.shape, -jnp.inf, m_sc.dtype)
        l_sc[...] = jnp.zeros(l_sc.shape, l_sc.dtype)
        acc_sc[...] = jnp.zeros(acc_sc.shape, acc_sc.dtype)

    # Project the current K/V tile ONCE per kv step with the full DxD weights
    # (lane-dense N=D matmuls). Heads are sliced from these VMEM buffers below,
    # so K/V HBM bytes and projection FLOPs are not repeated per head.
    k_sc[...] = jnp.dot(k_ref[0], wk_ref[...],
                        preferred_element_type=jnp.float32).astype(k_sc.dtype)
    v_sc[...] = jnp.dot(v_ref[0], wv_ref[...],
                        preferred_element_type=jnp.float32).astype(v_sc.dtype)

    # Additive mask bias (bf16 in HBM, f32 in-register), shared by all heads.
    bias = bias_ref[0].astype(jnp.float32)                      # (tq, tkv)

    # Per-head flash-attention update (static unroll; num_heads is small).
    # NOTE: p @ vh is inherently N=head_dim per head; everything else is N=D.
    for h in range(num_heads):
        sl = slice(h * head_dim, (h + 1) * head_dim)
        qh = q_sc[:, sl]                                        # (tq, hd)  bf16
        kh = k_sc[:, sl]                                        # (tkv, hd) bf16
        vh = v_sc[:, sl]                                        # (tkv, hd) bf16

        s = lax.dot_general(qh, kh, (((1,), (1,)), ((), ())),
                            preferred_element_type=jnp.float32)  # (tq, tkv)
        s = s + bias

        m_prev = m_sc[h]                                        # (tq, 1)
        m_new = jnp.maximum(m_prev, jnp.max(s, axis=-1, keepdims=True))
        alpha = jnp.exp(m_prev - m_new)
        p = jnp.exp(s - m_new)
        l_sc[h] = alpha * l_sc[h] + jnp.sum(p, axis=-1, keepdims=True)
        acc_sc[h] = alpha * acc_sc[h] + jnp.dot(
            p.astype(vh.dtype), vh, preferred_element_type=jnp.float32)
        m_sc[h] = m_new

    # End of the KV sweep: normalize every head (EUP reciprocal), fold heads
    # through the output projection (N=D lane-dense), single lane-dense store.
    @pl.when(kv == n_kv - 1)
    def _():
        inv_l = pl.reciprocal(l_sc[...], approx=True)            # (H, tq, 1)
        attn = (acc_sc[...] * inv_l).astype(jnp.bfloat16)        # (H, tq, hd)
        out = jnp.dot(attn[0], wo_ref[0], preferred_element_type=jnp.float32)
        for h in range(1, num_heads):
            out = out + jnp.dot(attn[h], wo_ref[h],
                                preferred_element_type=jnp.float32)
        o_ref[0] = out.astype(o_ref.dtype)


# ----------------------------------------------------------------------------
# Wrapper
# ----------------------------------------------------------------------------

def multi_head_attention(key, query, value, mask, wq, wk, wv, wo,
                         *, num_heads, dim_k,
                         q_tile=256, kv_tile=512,
                         vmem_limit_bytes=48 * 1024 * 1024):
    """Pallas port of Multi_Head_Attention.forward(key, query, value, mask).

    Weights are stored [in_dim, out_dim] (x @ W), bias-free, matching
    nn.Linear(dim_model, dim_model, bias=False).  Dropout is eval-mode identity.

    Defaults (tq=256, tkv=512, ~48 MiB VMEM limit) are sized for v7x's 64 MiB
    physical VMEM; on v5e/v6e (128 MiB) larger tiles / limits can be passed in.
    """
    B, Lq, D = query.shape
    Lk = key.shape[1]
    hd = D // num_heads
    scale = 1.0 / math.sqrt(dim_k)
    out_dtype = query.dtype

    # Tile sizes: full length if small, else a fixed (8,128)-legal tile; pad up.
    tq = Lq if Lq <= q_tile else q_tile            # q_tile is a multiple of 8
    tkv = Lk if Lk <= kv_tile else kv_tile         # kv_tile is a multiple of 128
    Lq_p = pl.cdiv(Lq, tq) * tq
    Lk_p = pl.cdiv(Lk, tkv) * tkv

    bf = jnp.bfloat16
    q = query.astype(bf)
    k = key.astype(bf)
    v = value.astype(bf)

    # Additive bias replaces compare+select masking.
    # TODO(synk): fully-masked query rows give softmax(scores) here instead of
    # the exactly-uniform average produced by masked_fill(-1e9); identical
    # whenever each row has at least one unmasked key.
    bias = jnp.where(mask == 0, jnp.float32(-1e9), jnp.float32(0.0))

    if Lq_p != Lq:
        q = jnp.pad(q, ((0, 0), (0, Lq_p - Lq), (0, 0)))
        bias = jnp.pad(bias, ((0, 0), (0, Lq_p - Lq), (0, 0)),
                       constant_values=-1e9)
    if Lk_p != Lk:
        k = jnp.pad(k, ((0, 0), (0, Lk_p - Lk), (0, 0)))
        v = jnp.pad(v, ((0, 0), (0, Lk_p - Lk), (0, 0)))
        bias = jnp.pad(bias, ((0, 0), (0, 0), (0, Lk_p - Lk)),
                       constant_values=-1e9)
    bias = bias.astype(bf)

    wq_b = wq.astype(bf)
    wk_b = wk.astype(bf)
    wv_b = wv.astype(bf)
    wo_r = wo.reshape(num_heads, hd, D).astype(bf)   # Wo[h] == Wo[h*hd:(h+1)*hd, :]

    n_q = Lq_p // tq
    n_kv = Lk_p // tkv

    kernel = functools.partial(_mha_kernel, num_heads=num_heads,
                               head_dim=hd, scale=scale)

    out = pl.pallas_call(
        kernel,
        out_shape=jax.ShapeDtypeStruct((B, Lq_p, D), out_dtype),
        grid_spec=pltpu.PrefetchScalarGridSpec(
            num_scalar_prefetch=0,
            grid=(B, n_q, n_kv),
            in_specs=[
                pl.BlockSpec((1, tq, D), lambda b, qi, kv: (b, qi, 0)),      # query
                pl.BlockSpec((1, tkv, D), lambda b, qi, kv: (b, kv, 0)),     # key
                pl.BlockSpec((1, tkv, D), lambda b, qi, kv: (b, kv, 0)),     # value
                pl.BlockSpec((1, tq, tkv), lambda b, qi, kv: (b, qi, kv)),   # mask bias
                pl.BlockSpec((D, D), lambda b, qi, kv: (0, 0)),              # Wq (resident)
                pl.BlockSpec((D, D), lambda b, qi, kv: (0, 0)),              # Wk (resident)
                pl.BlockSpec((D, D), lambda b, qi, kv: (0, 0)),              # Wv (resident)
                pl.BlockSpec((num_heads, hd, D), lambda b, qi, kv: (0, 0, 0)),  # Wo (resident)
            ],
            out_specs=pl.BlockSpec((1, tq, D), lambda b, qi, kv: (b, qi, 0)),
            scratch_shapes=[
                pltpu.VMEM((tq, D), jnp.bfloat16),              # scaled projected Q
                pltpu.VMEM((tkv, D), jnp.bfloat16),             # projected K tile
                pltpu.VMEM((tkv, D), jnp.bfloat16),             # projected V tile
                pltpu.VMEM((num_heads, tq, 1), jnp.float32),    # running max m
                pltpu.VMEM((num_heads, tq, 1), jnp.float32),    # running denom l
                pltpu.VMEM((num_heads, tq, hd), jnp.float32),   # per-head attn acc
            ],
        ),
        compiler_params=pltpu.CompilerParams(
            dimension_semantics=("parallel", "parallel", "arbitrary"),
            vmem_limit_bytes=vmem_limit_bytes,
        ),
    )(q, k, v, bias, wq_b, wk_b, wv_b, wo_r)

    if Lq_p != Lq:
        out = out[:, :Lq, :]
    return out


# ----------------------------------------------------------------------------
# Pure-JAX reference (mirrors the PyTorch module, eval mode) for a sanity check
# ----------------------------------------------------------------------------

def _reference_mha(key, query, value, mask, wq, wk, wv, wo, *, num_heads, dim_k):
    B, Lq, D = query.shape
    Lk = key.shape[1]
    hd = D // num_heads
    q = (query @ wq).reshape(B, Lq, num_heads, hd).transpose(0, 2, 1, 3)
    k = (key @ wk).reshape(B, Lk, num_heads, hd).transpose(0, 2, 1, 3)
    v = (value @ wv).reshape(B, Lk, num_heads, hd).transpose(0, 2, 1, 3)
    s = jnp.einsum('bhqd,bhkd->bhqk', q, k) / math.sqrt(dim_k)
    s = jnp.where(mask[:, None, :, :] == 0, -1.0e9, s)
    p = jax.nn.softmax(s, axis=-1)
    a = jnp.einsum('bhqk,bhkd->bhqd', p, v)
    a = a.transpose(0, 2, 1, 3).reshape(B, Lq, D)
    return a @ wo


# ----------------------------------------------------------------------------
# Driver
# ----------------------------------------------------------------------------

if __name__ == "__main__":
    B, L, D, H = 2, 8, 32, 4
    dim_k = D // H                      # scale used by Self_attention

    root = jax.random.PRNGKey(0)
    kq, kk, kv_, kwq, kwk, kwv, kwo = jax.random.split(root, 7)

    query = jax.random.normal(kq, (B, L, D), jnp.float32)
    key_t = jax.random.normal(kk, (B, L, D), jnp.float32)
    value = jax.random.normal(kv_, (B, L, D), jnp.float32)

    wscale = 1.0 / math.sqrt(D)
    wq = wscale * jax.random.normal(kwq, (D, D), jnp.float32)
    wk = wscale * jax.random.normal(kwk, (D, D), jnp.float32)
    wv = wscale * jax.random.normal(kwv, (D, D), jnp.float32)
    wo = wscale * jax.random.normal(kwo, (D, D), jnp.float32)

    mask = jnp.tril(jnp.ones((L, L), jnp.int32))[None, :, :].repeat(B, axis=0)

    out = multi_head_attention(key_t, query, value, mask, wq, wk, wv, wo,
                               num_heads=H, dim_k=dim_k)
    out = jax.block_until_ready(out)
    assert out.shape == (B, L, D)

    ref = _reference_mha(key_t, query, value, mask, wq, wk, wv, wo,
                         num_heads=H, dim_k=dim_k)
    rel = float(jnp.linalg.norm(out - ref) / (jnp.linalg.norm(ref) + 1e-12))
    assert rel < 5e-2, f"relative error too large: {rel}"

    print("KERNEL_OK")
</pallas_src>

<mosaic_0001>
module attributes {stable_mosaic.version = 11 : i64} {
  func.func @_mha_kernel(%arg0: i32, %arg1: i32, %arg2: i32, %arg3: memref<1x8x32xbf16, #tpu.memory_space<vmem>>, %arg4: memref<1x8x32xbf16, #tpu.memory_space<vmem>>, %arg5: memref<1x8x32xbf16, #tpu.memory_space<vmem>>, %arg6: memref<1x8x8xbf16, #tpu.memory_space<vmem>>, %arg7: memref<32x32xbf16, #tpu.memory_space<vmem>>, %arg8: memref<32x32xbf16, #tpu.memory_space<vmem>>, %arg9: memref<32x32xbf16, #tpu.memory_space<vmem>>, %arg10: memref<4x8x32xbf16, #tpu.memory_space<vmem>>, %arg11: memref<1x8x32xf32, #tpu.memory_space<vmem>>, %arg12: memref<8x32xbf16, #tpu.memory_space<vmem>>, %arg13: memref<8x32xbf16, #tpu.memory_space<vmem>>, %arg14: memref<8x32xbf16, #tpu.memory_space<vmem>>, %arg15: memref<4x8x1xf32, #tpu.memory_space<vmem>>, %arg16: memref<4x8x1xf32, #tpu.memory_space<vmem>>, %arg17: memref<4x8x8xf32, #tpu.memory_space<vmem>>) attributes {dimension_semantics = [#tpu.dimension_semantics<parallel>, #tpu.dimension_semantics<parallel>, #tpu.dimension_semantics<arbitrary>], iteration_bounds = array<i64: 2, 1, 1>, scalar_prefetch = 0 : i64, scratch_operands = 6 : i64, tpu.core_type = #tpu.core_type<tc>, window_params = [{transform_indices = @transform_0, window_bounds = array<i64: 1, 8, 32>}, {transform_indices = @transform_1, window_bounds = array<i64: 1, 8, 32>}, {transform_indices = @transform_2, window_bounds = array<i64: 1, 8, 32>}, {transform_indices = @transform_3, window_bounds = array<i64: 1, 8, 8>}, {pipeline_mode = #tpu.pipeline_mode<synchronous>, transform_indices = @transform_4, window_bounds = array<i64: 32, 32>}, {pipeline_mode = #tpu.pipeline_mode<synchronous>, transform_indices = @transform_5, window_bounds = array<i64: 32, 32>}, {pipeline_mode = #tpu.pipeline_mode<synchronous>, transform_indices = @transform_6, window_bounds = array<i64: 32, 32>}, {pipeline_mode = #tpu.pipeline_mode<synchronous>, transform_indices = @transform_7, window_bounds = array<i64: 4, 8, 32>}, {transform_indices = @transform_8, window_bounds = array<i64: 1, 8, 32>}]} {
    %c0_i32 = arith.constant 0 : i32
    %0 = arith.cmpi eq, %arg2, %c0_i32 : i32
    %1 = arith.extui %0 : i1 to i32
    %c0_i32_0 = arith.constant 0 : i32
    %2 = arith.cmpi ne, %1, %c0_i32_0 : i32
    scf.if %2 {
      %c0_126 = arith.constant 0 : index
      %c0_127 = arith.constant 0 : index
      %c0_128 = arith.constant 0 : index
      %169 = vector.load %arg3[%c0_126, %c0_127, %c0_128] : memref<1x8x32xbf16, #tpu.memory_space<vmem>>, vector<1x8x32xbf16>
      %170 = vector.shape_cast %169 : vector<1x8x32xbf16> to vector<8x32xbf16>
      %c0_129 = arith.constant 0 : index
      %c0_130 = arith.constant 0 : index
      %171 = vector.load %arg7[%c0_129, %c0_130] : memref<32x32xbf16, #tpu.memory_space<vmem>>, vector<32x32xbf16>
      %cst_131 = arith.constant dense<0.000000e+00> : vector<8x32xf32>
      %172 = tpu.matmul %170, %171, %cst_131 {dimension_numbers = #tpu.dot_dimension_numbers<[1], [0], [0], [1], [0, 0, 1, 1], [], []>} : vector<8x32xbf16>, vector<32x32xbf16>, vector<8x32xf32> -> vector<8x32xf32>
      %cst_132 = arith.constant 0.353553385 : f32
      %173 = vector.broadcast %cst_132 : f32 to vector<8x32xf32>
      %174 = arith.mulf %172, %173 : vector<8x32xf32>
      %175 = arith.truncf %174 : vector<8x32xf32> to vector<8x32xbf16>
      %c0_133 = arith.constant 0 : index
      %c0_134 = arith.constant 0 : index
      %176 = vector.load %arg12[%c0_133, %c0_134] : memref<8x32xbf16, #tpu.memory_space<vmem>>, vector<8x32xbf16>
      tpu.vector_store %arg12[%c0_133, %c0_134], %175 {strides = array<i32>} : memref<8x32xbf16, #tpu.memory_space<vmem>>, vector<8x32xbf16>,
      %cst_135 = arith.constant 0xFF800000 : f32
      %177 = vector.broadcast %cst_135 : f32 to vector<4x8x1xf32>
      %c0_136 = arith.constant 0 : index
      %c0_137 = arith.constant 0 : index
      %c0_138 = arith.constant 0 : index
      %178 = vector.load %arg15[%c0_136, %c0_137, %c0_138] : memref<4x8x1xf32, #tpu.memory_space<vmem>>, vector<4x8x1xf32>
      tpu.vector_store %arg15[%c0_136, %c0_137, %c0_138], %177 {strides = array<i32>} : memref<4x8x1xf32, #tpu.memory_space<vmem>>, vector<4x8x1xf32>,
      %cst_139 = arith.constant 0.000000e+00 : f32
      %179 = vector.broadcast %cst_139 : f32 to vector<4x8x1xf32>
      %c0_140 = arith.constant 0 : index
      %c0_141 = arith.constant 0 : index
      %c0_142 = arith.constant 0 : index
      %180 = vector.load %arg16[%c0_140, %c0_141, %c0_142] : memref<4x8x1xf32, #tpu.memory_space<vmem>>, vector<4x8x1xf32>
      tpu.vector_store %arg16[%c0_140, %c0_141, %c0_142], %179 {strides = array<i32>} : memref<4x8x1xf32, #tpu.memory_space<vmem>>, vector<4x8x1xf32>,
      %cst_143 = arith.constant 0.000000e+00 : f32
      %181 = vector.broadcast %cst_143 : f32 to vector<4x8x8xf32>
      %c0_144 = arith.constant 0 : index
      %c0_145 = arith.constant 0 : index
      %c0_146 = arith.constant 0 : index
      %182 = vector.load %arg17[%c0_144, %c0_145, %c0_146] : memref<4x8x8xf32, #tpu.memory_space<vmem>>, vector<4x8x8xf32>
      tpu.vector_store %arg17[%c0_144, %c0_145, %c0_146], %181 {strides = array<i32>} : memref<4x8x8xf32, #tpu.memory_space<vmem>>, vector<4x8x8xf32>,
    } else {
    }
    %c0 = arith.constant 0 : index
    %c0_1 = arith.constant 0 : index
    %c0_2 = arith.constant 0 : index
    %3 = vector.load %arg4[%c0, %c0_1, %c0_2] : memref<1x8x32xbf16, #tpu.memory_space<vmem>>, vector<1x8x32xbf16>
    %4 = vector.shape_cast %3 : vector<1x8x32xbf16> to vector<8x32xbf16>
    %c0_3 = arith.constant 0 : index
    %c0_4 = arith.constant 0 : index
    %5 = vector.load %arg8[%c0_3, %c0_4] : memref<32x32xbf16, #tpu.memory_space<vmem>>, vector<32x32xbf16>
    %cst = arith.constant dense<0.000000e+00> : vector<8x32xf32>
    %6 = tpu.matmul %4, %5, %cst {dimension_numbers = #tpu.dot_dimension_numbers<[1], [0], [0], [1], [0, 0, 1, 1], [], []>} : vector<8x32xbf16>, vector<32x32xbf16>, vector<8x32xf32> -> vector<8x32xf32>
    %7 = arith.truncf %6 : vector<8x32xf32> to vector<8x32xbf16>
    %c0_5 = arith.constant 0 : index
    %c0_6 = arith.constant 0 : index
    %8 = vector.load %arg13[%c0_5, %c0_6] : memref<8x32xbf16, #tpu.memory_space<vmem>>, vector<8x32xbf16>
    tpu.vector_store %arg13[%c0_5, %c0_6], %7 {strides = array<i32>} : memref<8x32xbf16, #tpu.memory_space<vmem>>, vector<8x32xbf16>,
    %c0_7 = arith.constant 0 : index
    %c0_8 = arith.constant 0 : index
    %c0_9 = arith.constant 0 : index
    %9 = vector.load %arg5[%c0_7, %c0_8, %c0_9] : memref<1x8x32xbf16, #tpu.memory_space<vmem>>, vector<1x8x32xbf16>
    %10 = vector.shape_cast %9 : vector<1x8x32xbf16> to vector<8x32xbf16>
    %c0_10 = arith.constant 0 : index
    %c0_11 = arith.constant 0 : index
    %11 = vector.load %arg9[%c0_10, %c0_11] : memref<32x32xbf16, #tpu.memory_space<vmem>>, vector<32x32xbf16>
    %cst_12 = arith.constant dense<0.000000e+00> : vector<8x32xf32>
    %12 = tpu.matmul %10, %11, %cst_12 {dimension_numbers = #tpu.dot_dimension_numbers<[1], [0], [0], [1], [0, 0, 1, 1], [], []>} : vector<8x32xbf16>, vector<32x32xbf16>, vector<8x32xf32> -> vector<8x32xf32>
    %13 = arith.truncf %12 : vector<8x32xf32> to vector<8x32xbf16>
    %c0_13 = arith.constant 0 : index
    %c0_14 = arith.constant 0 : index
    %14 = vector.load %arg14[%c0_13, %c0_14] : memref<8x32xbf16, #tpu.memory_space<vmem>>, vector<8x32xbf16>
    tpu.vector_store %arg14[%c0_13, %c0_14], %13 {strides = array<i32>} : memref<8x32xbf16, #tpu.memory_space<vmem>>, vector<8x32xbf16>,
    %c0_15 = arith.constant 0 : index
    %c0_16 = arith.constant 0 : index
    %c0_17 = arith.constant 0 : index
    %15 = vector.load %arg6[%c0_15, %c0_16, %c0_17] : memref<1x8x8xbf16, #tpu.memory_space<vmem>>, vector<1x8x8xbf16>
    %16 = vector.shape_cast %15 : vector<1x8x8xbf16> to vector<8x8xbf16>
    %17 = arith.extf %16 : vector<8x8xbf16> to vector<8x8xf32>
    %c0_18 = arith.constant 0 : index
    %c0_19 = arith.constant 0 : index
    %18 = vector.load %arg12[%c0_18, %c0_19] : memref<8x32xbf16, #tpu.memory_space<vmem>>, vector<8x8xbf16>
    %c0_20 = arith.constant 0 : index
    %c0_21 = arith.constant 0 : index
    %19 = vector.load %arg13[%c0_20, %c0_21] : memref<8x32xbf16, #tpu.memory_space<vmem>>, vector<8x8xbf16>
    %c0_22 = arith.constant 0 : index
    %c0_23 = arith.constant 0 : index
    %20 = vector.load %arg14[%c0_22, %c0_23] : memref<8x32xbf16, #tpu.memory_space<vmem>>, vector<8x8xbf16>
    %cst_24 = arith.constant dense<0.000000e+00> : vector<8x8xf32>
    %21 = tpu.matmul %18, %19, %cst_24 {dimension_numbers = #tpu.dot_dimension_numbers<[1], [1], [0], [0], [0, 0, 1, 0], [], []>} : vector<8x8xbf16>, vector<8x8xbf16>, vector<8x8xf32> -> vector<8x8xf32>
    %22 = arith.addf %21, %17 : vector<8x8xf32>
    %c0_25 = arith.constant 0 : index
    %c0_26 = arith.constant 0 : index
    %c0_27 = arith.constant 0 : index
    %23 = vector.load %arg15[%c0_25, %c0_26, %c0_27] : memref<4x8x1xf32, #tpu.memory_space<vmem>>, vector<1x8x1xf32>
    %24 = vector.shape_cast %23 : vector<1x8x1xf32> to vector<8x1xf32>
    %cst_28 = arith.constant dense<0xFF800000> : vector<8xf32>
    %25 = vector.multi_reduction <maximumf>, %22, %cst_28 [1] : vector<8x8xf32> to vector<8xf32>
    %26 = vector.shape_cast %25 : vector<8xf32> to vector<8x1xf32>
    %27 = arith.maximumf %24, %26 : vector<8x1xf32>
    %28 = arith.subf %24, %27 : vector<8x1xf32>
    %29 = math.exp %28 : vector<8x1xf32>
    %30 = vector.broadcast %27 : vector<8x1xf32> to vector<8x8xf32>
    %31 = arith.subf %22, %30 : vector<8x8xf32>
    %32 = math.exp %31 : vector<8x8xf32>
    %c0_29 = arith.constant 0 : index
    %c0_30 = arith.constant 0 : index
    %c0_31 = arith.constant 0 : index
    %33 = vector.load %arg16[%c0_29, %c0_30, %c0_31] : memref<4x8x1xf32, #tpu.memory_space<vmem>>, vector<1x8x1xf32>
    %34 = vector.shape_cast %33 : vector<1x8x1xf32> to vector<8x1xf32>
    %35 = arith.mulf %29, %34 : vector<8x1xf32>
    %cst_32 = arith.constant dense<0.000000e+00> : vector<8xf32>
    %36 = vector.multi_reduction <add>, %32, %cst_32 [1] : vector<8x8xf32> to vector<8xf32>
    %37 = vector.shape_cast %36 : vector<8xf32> to vector<8x1xf32>
    %38 = arith.addf %35, %37 : vector<8x1xf32>
    %c0_33 = arith.constant 0 : index
    %c0_34 = arith.constant 0 : index
    %c0_35 = arith.constant 0 : index
    %39 = vector.load %arg16[%c0_33, %c0_34, %c0_35] : memref<4x8x1xf32, #tpu.memory_space<vmem>>, vector<1x8x1xf32>
    %40 = vector.shape_cast %39 : vector<1x8x1xf32> to vector<8x1xf32>
    %41 = vector.shape_cast %38 : vector<8x1xf32> to vector<1x8x1xf32>
    tpu.vector_store %arg16[%c0_33, %c0_34, %c0_35], %41 {strides = array<i32>} : memref<4x8x1xf32, #tpu.memory_space<vmem>>, vector<1x8x1xf32>,
    %c0_36 = arith.constant 0 : index
    %c0_37 = arith.constant 0 : index
    %c0_38 = arith.constant 0 : index
    %42 = vector.load %arg17[%c0_36, %c0_37, %c0_38] : memref<4x8x8xf32, #tpu.memory_space<vmem>>, vector<1x8x8xf32>
    %43 = vector.shape_cast %42 : vector<1x8x8xf32> to vector<8x8xf32>
    %44 = vector.broadcast %29 : vector<8x1xf32> to vector<8x8xf32>
    %45 = arith.mulf %44, %43 : vector<8x8xf32>
    %46 = arith.truncf %32 : vector<8x8xf32> to vector<8x8xbf16>
    %cst_39 = arith.constant dense<0.000000e+00> : vector<8x8xf32>
    %47 = tpu.matmul %46, %20, %cst_39 {dimension_numbers = #tpu.dot_dimension_numbers<[1], [0], [0], [1], [0, 0, 1, 1], [], []>} : vector<8x8xbf16>, vector<8x8xbf16>, vector<8x8xf32> -> vector<8x8xf32>
    %48 = arith.addf %45, %47 : vector<8x8xf32>
    %c0_40 = arith.constant 0 : index
    %c0_41 = arith.constant 0 : index
    %c0_42 = arith.constant 0 : index
    %49 = vector.load %arg17[%c0_40, %c0_41, %c0_42] : memref<4x8x8xf32, #tpu.memory_space<vmem>>, vector<1x8x8xf32>
    %50 = vector.shape_cast %49 : vector<1x8x8xf32> to vector<8x8xf32>
    %51 = vector.shape_cast %48 : vector<8x8xf32> to vector<1x8x8xf32>
    tpu.vector_store %arg17[%c0_40, %c0_41, %c0_42], %51 {strides = array<i32>} : memref<4x8x8xf32, #tpu.memory_space<vmem>>, vector<1x8x8xf32>,
    %c0_43 = arith.constant 0 : index
    %c0_44 = arith.constant 0 : index
    %c0_45 = arith.constant 0 : index
    %52 = vector.load %arg15[%c0_43, %c0_44, %c0_45] : memref<4x8x1xf32, #tpu.memory_space<vmem>>, vector<1x8x1xf32>
    %53 = vector.shape_cast %52 : vector<1x8x1xf32> to vector<8x1xf32>
    %54 = vector.shape_cast %27 : vector<8x1xf32> to vector<1x8x1xf32>
    tpu.vector_store %arg15[%c0_43, %c0_44, %c0_45], %54 {strides = array<i32>} : memref<4x8x1xf32, #tpu.memory_space<vmem>>, vector<1x8x1xf32>,
    %c0_46 = arith.constant 0 : index
    %c8 = arith.constant 8 : index
    %55 = vector.load %arg12[%c0_46, %c8] : memref<8x32xbf16, #tpu.memory_space<vmem>>, vector<8x8xbf16>
    %c0_47 = arith.constant 0 : index
    %c8_48 = arith.constant 8 : index
    %56 = vector.load %arg13[%c0_47, %c8_48] : memref<8x32xbf16, #tpu.memory_space<vmem>>, vector<8x8xbf16>
    %c0_49 = arith.constant 0 : index
    %c8_50 = arith.constant 8 : index
    %57 = vector.load %arg14[%c0_49, %c8_50] : memref<8x32xbf16, #tpu.memory_space<vmem>>, vector<8x8xbf16>
    %cst_51 = arith.constant dense<0.000000e+00> : vector<8x8xf32>
    %58 = tpu.matmul %55, %56, %cst_51 {dimension_numbers = #tpu.dot_dimension_numbers<[1], [1], [0], [0], [0, 0, 1, 0], [], []>} : vector<8x8xbf16>, vector<8x8xbf16>, vector<8x8xf32> -> vector<8x8xf32>
    %59 = arith.addf %58, %17 : vector<8x8xf32>
    %c1 = arith.constant 1 : index
    %c0_52 = arith.constant 0 : index
    %c0_53 = arith.constant 0 : index
    %60 = vector.load %arg15[%c1, %c0_52, %c0_53] : memref<4x8x1xf32, #tpu.memory_space<vmem>>, vector<1x8x1xf32>
    %61 = vector.shape_cast %60 : vector<1x8x1xf32> to vector<8x1xf32>
    %cst_54 = arith.constant dense<0xFF800000> : vector<8xf32>
    %62 = vector.multi_reduction <maximumf>, %59, %cst_54 [1] : vector<8x8xf32> to vector<8xf32>
    %63 = vector.shape_cast %62 : vector<8xf32> to vector<8x1xf32>
    %64 = arith.maximumf %61, %63 : vector<8x1xf32>
    %65 = arith.subf %61, %64 : vector<8x1xf32>
    %66 = math.exp %65 : vector<8x1xf32>
    %67 = vector.broadcast %64 : vector<8x1xf32> to vector<8x8xf32>
    %68 = arith.subf %59, %67 : vector<8x8xf32>
    %69 = math.exp %68 : vector<8x8xf32>
    %c1_55 = arith.constant 1 : index
    %c0_56 = arith.constant 0 : index
    %c0_57 = arith.constant 0 : index
    %70 = vector.load %arg16[%c1_55, %c0_56, %c0_57] : memref<4x8x1xf32, #tpu.memory_space<vmem>>, vector<1x8x1xf32>
    %71 = vector.shape_cast %70 : vector<1x8x1xf32> to vector<8x1xf32>
    %72 = arith.mulf %66, %71 : vector<8x1xf32>
    %cst_58 = arith.constant dense<0.000000e+00> : vector<8xf32>
    %73 = vector.multi_reduction <add>, %69, %cst_58 [1] : vector<8x8xf32> to vector<8xf32>
    %74 = vector.shape_cast %73 : vector<8xf32> to vector<8x1xf32>
    %75 = arith.addf %72, %74 : vector<8x1xf32>
    %c1_59 = arith.constant 1 : index
    %c0_60 = arith.constant 0 : index
    %c0_61 = arith.constant 0 : index
    %76 = vector.load %arg16[%c1_59, %c0_60, %c0_61] : memref<4x8x1xf32, #tpu.memory_space<vmem>>, vector<1x8x1xf32>
    %77 = vector.shape_cast %76 : vector<1x8x1xf32> to vector<8x1xf32>
    %78 = vector.shape_cast %75 : vector<8x1xf32> to vector<1x8x1xf32>
    tpu.vector_store %arg16[%c1_59, %c0_60, %c0_61], %78 {strides = array<i32>} : memref<4x8x1xf32, #tpu.memory_space<vmem>>, vector<1x8x1xf32>,
    %c1_62 = arith.constant 1 : index
    %c0_63 = arith.constant 0 : index
    %c0_64 = arith.constant 0 : index
    %79 = vector.load %arg17[%c1_62, %c0_63, %c0_64] : memref<4x8x8xf32, #tpu.memory_space<vmem>>, vector<1x8x8xf32>
    %80 = vector.shape_cast %79 : vector<1x8x8xf32> to vector<8x8xf32>
    %81 = vector.broadcast %66 : vector<8x1xf32> to vector<8x8xf32>
    %82 = arith.mulf %81, %80 : vector<8x8xf32>
    %83 = arith.truncf %69 : vector<8x8xf32> to vector<8x8xbf16>
    %cst_65 = arith.constant dense<0.000000e+00> : vector<8x8xf32>
    %84 = tpu.matmul %83, %57, %cst_65 {dimension_numbers = #tpu.dot_dimension_numbers<[1], [0], [0], [1], [0, 0, 1, 1], [], []>} : vector<8x8xbf16>, vector<8x8xbf16>, vector<8x8xf32> -> vector<8x8xf32>
    %85 = arith.addf %82, %84 : vector<8x8xf32>
    %c1_66 = arith.constant 1 : index
    %c0_67 = arith.constant 0 : index
    %c0_68 = arith.constant 0 : index
    %86 = vector.load %arg17[%c1_66, %c0_67, %c0_68] : memref<4x8x8xf32, #tpu.memory_space<vmem>>, vector<1x8x8xf32>
    %87 = vector.shape_cast %86 : vector<1x8x8xf32> to vector<8x8xf32>
    %88 = vector.shape_cast %85 : vector<8x8xf32> to vector<1x8x8xf32>
    tpu.vector_store %arg17[%c1_66, %c0_67, %c0_68], %88 {strides = array<i32>} : memref<4x8x8xf32, #tpu.memory_space<vmem>>, vector<1x8x8xf32>,
    %c1_69 = arith.constant 1 : index
    %c0_70 = arith.constant 0 : index
    %c0_71 = arith.constant 0 : index
    %89 = vector.load %arg15[%c1_69, %c0_70, %c0_71] : memref<4x8x1xf32, #tpu.memory_space<vmem>>, vector<1x8x1xf32>
    %90 = vector.shape_cast %89 : vector<1x8x1xf32> to vector<8x1xf32>
    %91 = vector.shape_cast %64 : vector<8x1xf32> to vector<1x8x1xf32>
    tpu.vector_store %arg15[%c1_69, %c0_70, %c0_71], %91 {strides = array<i32>} : memref<4x8x1xf32, #tpu.memory_space<vmem>>, vector<1x8x1xf32>,
    %c0_72 = arith.constant 0 : index
    %c16 = arith.constant 16 : index
    %92 = vector.load %arg12[%c0_72, %c16] : memref<8x32xbf16, #tpu.memory_space<vmem>>, vector<8x8xbf16>
    %c0_73 = arith.constant 0 : index
    %c16_74 = arith.constant 16 : index
    %93 = vector.load %arg13[%c0_73, %c16_74] : memref<8x32xbf16, #tpu.memory_space<vmem>>, vector<8x8xbf16>
    %c0_75 = arith.constant 0 : index
    %c16_76 = arith.constant 16 : index
    %94 = vector.load %arg14[%c0_75, %c16_76] : memref<8x32xbf16, #tpu.memory_space<vmem>>, vector<8x8xbf16>
    %cst_77 = arith.constant dense<0.000000e+00> : vector<8x8xf32>
    %95 = tpu.matmul %92, %93, %cst_77 {dimension_numbers = #tpu.dot_dimension_numbers<[1], [1], [0], [0], [0, 0, 1, 0], [], []>} : vector<8x8xbf16>, vector<8x8xbf16>, vector<8x8xf32> -> vector<8x8xf32>
    %96 = arith.addf %95, %17 : vector<8x8xf32>
    %c2 = arith.constant 2 : index
    %c0_78 = arith.constant 0 : index
    %c0_79 = arith.constant 0 : index
    %97 = vector.load %arg15[%c2, %c0_78, %c0_79] : memref<4x8x1xf32, #tpu.memory_space<vmem>>, vector<1x8x1xf32>
    %98 = vector.shape_cast %97 : vector<1x8x1xf32> to vector<8x1xf32>
    %cst_80 = arith.constant dense<0xFF800000> : vector<8xf32>
    %99 = vector.multi_reduction <maximumf>, %96, %cst_80 [1] : vector<8x8xf32> to vector<8xf32>
    %100 = vector.shape_cast %99 : vector<8xf32> to vector<8x1xf32>
    %101 = arith.maximumf %98, %100 : vector<8x1xf32>
    %102 = arith.subf %98, %101 : vector<8x1xf32>
    %103 = math.exp %102 : vector<8x1xf32>
    %104 = vector.broadcast %101 : vector<8x1xf32> to vector<8x8xf32>
    %105 = arith.subf %96, %104 : vector<8x8xf32>
    %106 = math.exp %105 : vector<8x8xf32>
    %c2_81 = arith.constant 2 : index
    %c0_82 = arith.constant 0 : index
    %c0_83 = arith.constant 0 : index
    %107 = vector.load %arg16[%c2_81, %c0_82, %c0_83] : memref<4x8x1xf32, #tpu.memory_space<vmem>>, vector<1x8x1xf32>
    %108 = vector.shape_cast %107 : vector<1x8x1xf32> to vector<8x1xf32>
    %109 = arith.mulf %103, %108 : vector<8x1xf32>
    %cst_84 = arith.constant dense<0.000000e+00> : vector<8xf32>
    %110 = vector.multi_reduction <add>, %106, %cst_84 [1] : vector<8x8xf32> to vector<8xf32>
    %111 = vector.shape_cast %110 : vector<8xf32> to vector<8x1xf32>
    %112 = arith.addf %109, %111 : vector<8x1xf32>
    %c2_85 = arith.constant 2 : index
    %c0_86 = arith.constant 0 : index
    %c0_87 = arith.constant 0 : index
    %113 = vector.load %arg16[%c2_85, %c0_86, %c0_87] : memref<4x8x1xf32, #tpu.memory_space<vmem>>, vector<1x8x1xf32>
    %114 = vector.shape_cast %113 : vector<1x8x1xf32> to vector<8x1xf32>
    %115 = vector.shape_cast %112 : vector<8x1xf32> to vector<1x8x1xf32>
    tpu.vector_store %arg16[%c2_85, %c0_86, %c0_87], %115 {strides = array<i32>} : memref<4x8x1xf32, #tpu.memory_space<vmem>>, vector<1x8x1xf32>,
    %c2_88 = arith.constant 2 : index
    %c0_89 = arith.constant 0 : index
    %c0_90 = arith.constant 0 : index
    %116 = vector.load %arg17[%c2_88, %c0_89, %c0_90] : memref<4x8x8xf32, #tpu.memory_space<vmem>>, vector<1x8x8xf32>
    %117 = vector.shape_cast %116 : vector<1x8x8xf32> to vector<8x8xf32>
    %118 = vector.broadcast %103 : vector<8x1xf32> to vector<8x8xf32>
    %119 = arith.mulf %118, %117 : vector<8x8xf32>
    %120 = arith.truncf %106 : vector<8x8xf32> to vector<8x8xbf16>
    %cst_91 = arith.constant dense<0.000000e+00> : vector<8x8xf32>
    %121 = tpu.matmul %120, %94, %cst_91 {dimension_numbers = #tpu.dot_dimension_numbers<[1], [0], [0], [1], [0, 0, 1, 1], [], []>} : vector<8x8xbf16>, vector<8x8xbf16>, vector<8x8xf32> -> vector<8x8xf32>
    %122 = arith.addf %119, %121 : vector<8x8xf32>
    %c2_92 = arith.constant 2 : index
    %c0_93 = arith.constant 0 : index
    %c0_94 = arith.constant 0 : index
    %123 = vector.load %arg17[%c2_92, %c0_93, %c0_94] : memref<4x8x8xf32, #tpu.memory_space<vmem>>, vector<1x8x8xf32>
    %124 = vector.shape_cast %123 : vector<1x8x8xf32> to vector<8x8xf32>
    %125 = vector.shape_cast %122 : vector<8x8xf32> to vector<1x8x8xf32>
    tpu.vector_store %arg17[%c2_92, %c0_93, %c0_94], %125 {strides = array<i32>} : memref<4x8x8xf32, #tpu.memory_space<vmem>>, vector<1x8x8xf32>,
    %c2_95 = arith.constant 2 : index
    %c0_96 = arith.constant 0 : index
    %c0_97 = arith.constant 0 : index
    %126 = vector.load %arg15[%c2_95, %c0_96, %c0_97] : memref<4x8x1xf32, #tpu.memory_space<vmem>>, vector<1x8x1xf32>
    %127 = vector.shape_cast %126 : vector<1x8x1xf32> to vector<8x1xf32>
    %128 = vector.shape_cast %101 : vector<8x1xf32> to vector<1x8x1xf32>
    tpu.vector_store %arg15[%c2_95, %c0_96, %c0_97], %128 {strides = array<i32>} : memref<4x8x1xf32, #tpu.memory_space<vmem>>, vector<1x8x1xf32>,
    %c0_98 = arith.constant 0 : index
    %c24 = arith.constant 24 : index
    %129 = vector.load %arg12[%c0_98, %c24] : memref<8x32xbf16, #tpu.memory_space<vmem>>, vector<8x8xbf16>
    %c0_99 = arith.constant 0 : index
    %c24_100 = arith.constant 24 : index
    %130 = vector.load %arg13[%c0_99, %c24_100] : memref<8x32xbf16, #tpu.memory_space<vmem>>, vector<8x8xbf16>
    %c0_101 = arith.constant 0 : index
    %c24_102 = arith.constant 24 : index
    %131 = vector.load %arg14[%c0_101, %c24_102] : memref<8x32xbf16, #tpu.memory_space<vmem>>, vector<8x8xbf16>
    %cst_103 = arith.constant dense<0.000000e+00> : vector<8x8xf32>
    %132 = tpu.matmul %129, %130, %cst_103 {dimension_numbers = #tpu.dot_dimension_numbers<[1], [1], [0], [0], [0, 0, 1, 0], [], []>} : vector<8x8xbf16>, vector<8x8xbf16>, vector<8x8xf32> -> vector<8x8xf32>
    %133 = arith.addf %132, %17 : vector<8x8xf32>
    %c3 = arith.constant 3 : index
    %c0_104 = arith.constant 0 : index
    %c0_105 = arith.constant 0 : index
    %134 = vector.load %arg15[%c3, %c0_104, %c0_105] : memref<4x8x1xf32, #tpu.memory_space<vmem>>, vector<1x8x1xf32>
    %135 = vector.shape_cast %134 : vector<1x8x1xf32> to vector<8x1xf32>
    %cst_106 = arith.constant dense<0xFF800000> : vector<8xf32>
    %136 = vector.multi_reduction <maximumf>, %133, %cst_106 [1] : vector<8x8xf32> to vector<8xf32>
    %137 = vector.shape_cast %136 : vector<8xf32> to vector<8x1xf32>
    %138 = arith.maximumf %135, %137 : vector<8x1xf32>
    %139 = arith.subf %135, %138 : vector<8x1xf32>
    %140 = math.exp %139 : vector<8x1xf32>
    %141 = vector.broadcast %138 : vector<8x1xf32> to vector<8x8xf32>
    %142 = arith.subf %133, %141 : vector<8x8xf32>
    %143 = math.exp %142 : vector<8x8xf32>
    %c3_107 = arith.constant 3 : index
    %c0_108 = arith.constant 0 : index
    %c0_109 = arith.constant 0 : index
    %144 = vector.load %arg16[%c3_107, %c0_108, %c0_109] : memref<4x8x1xf32, #tpu.memory_space<vmem>>, vector<1x8x1xf32>
    %145 = vector.shape_cast %144 : vector<1x8x1xf32> to vector<8x1xf32>
    %146 = arith.mulf %140, %145 : vector<8x1xf32>
    %cst_110 = arith.constant dense<0.000000e+00> : vector<8xf32>
    %147 = vector.multi_reduction <add>, %143, %cst_110 [1] : vector<8x8xf32> to vector<8xf32>
    %148 = vector.shape_cast %147 : vector<8xf32> to vector<8x1xf32>
    %149 = arith.addf %146, %148 : vector<8x1xf32>
    %c3_111 = arith.constant 3 : index
    %c0_112 = arith.constant 0 : index
    %c0_113 = arith.constant 0 : index
    %150 = vector.load %arg16[%c3_111, %c0_112, %c0_113] : memref<4x8x1xf32, #tpu.memory_space<vmem>>, vector<1x8x1xf32>
    %151 = vector.shape_cast %150 : vector<1x8x1xf32> to vector<8x1xf32>
    %152 = vector.shape_cast %149 : vector<8x1xf32> to vector<1x8x1xf32>
    tpu.vector_store %arg16[%c3_111, %c0_112, %c0_113], %152 {strides = array<i32>} : memref<4x8x1xf32, #tpu.memory_space<vmem>>, vector<1x8x1xf32>,
    %c3_114 = arith.constant 3 : index
    %c0_115 = arith.constant 0 : index
    %c0_116 = arith.constant 0 : index
    %153 = vector.load %arg17[%c3_114, %c0_115, %c0_116] : memref<4x8x8xf32, #tpu.memory_space<vmem>>, vector<1x8x8xf32>
    %154 = vector.shape_cast %153 : vector<1x8x8xf32> to vector<8x8xf32>
    %155 = vector.broadcast %140 : vector<8x1xf32> to vector<8x8xf32>
    %156 = arith.mulf %155, %154 : vector<8x8xf32>
    %157 = arith.truncf %143 : vector<8x8xf32> to vector<8x8xbf16>
    %cst_117 = arith.constant dense<0.000000e+00> : vector<8x8xf32>
    %158 = tpu.matmul %157, %131, %cst_117 {dimension_numbers = #tpu.dot_dimension_numbers<[1], [0], [0], [1], [0, 0, 1, 1], [], []>} : vector<8x8xbf16>, vector<8x8xbf16>, vector<8x8xf32> -> vector<8x8xf32>
    %159 = arith.addf %156, %158 : vector<8x8xf32>
    %c3_118 = arith.constant 3 : index
    %c0_119 = arith.constant 0 : index
    %c0_120 = arith.constant 0 : index
    %160 = vector.load %arg17[%c3_118, %c0_119, %c0_120] : memref<4x8x8xf32, #tpu.memory_space<vmem>>, vector<1x8x8xf32>
    %161 = vector.shape_cast %160 : vector<1x8x8xf32> to vector<8x8xf32>
    %162 = vector.shape_cast %159 : vector<8x8xf32> to vector<1x8x8xf32>
    tpu.vector_store %arg17[%c3_118, %c0_119, %c0_120], %162 {strides = array<i32>} : memref<4x8x8xf32, #tpu.memory_space<vmem>>, vector<1x8x8xf32>,
    %c3_121 = arith.constant 3 : index
    %c0_122 = arith.constant 0 : index
    %c0_123 = arith.constant 0 : index
    %163 = vector.load %arg15[%c3_121, %c0_122, %c0_123] : memref<4x8x1xf32, #tpu.memory_space<vmem>>, vector<1x8x1xf32>
    %164 = vector.shape_cast %163 : vector<1x8x1xf32> to vector<8x1xf32>
    %165 = vector.shape_cast %138 : vector<8x1xf32> to vector<1x8x1xf32>
    tpu.vector_store %arg15[%c3_121, %c0_122, %c0_123], %165 {strides = array<i32>} : memref<4x8x1xf32, #tpu.memory_space<vmem>>, vector<1x8x1xf32>,
    %c0_i32_124 = arith.constant 0 : i32
    %166 = arith.cmpi eq, %arg2, %c0_i32_124 : i32
    %167 = arith.extui %166 : i1 to i32
    %c0_i32_125 = arith.constant 0 : i32
    %168 = arith.cmpi ne, %167, %c0_i32_125 : i32
    scf.if %168 {
      %c0_126 = arith.constant 0 : index
      %c0_127 = arith.constant 0 : index
      %c0_128 = arith.constant 0 : index
      %169 = vector.load %arg16[%c0_126, %c0_127, %c0_128] : memref<4x8x1xf32, #tpu.memory_space<vmem>>, vector<4x8x1xf32>
      %170 = tpu.reciprocal %169 {approx = true} : vector<4x8x1xf32> -> vector<4x8x1xf32>
      %c0_129 = arith.constant 0 : index
      %c0_130 = arith.constant 0 : index
      %c0_131 = arith.constant 0 : index
      %171 = vector.load %arg17[%c0_129, %c0_130, %c0_131] : memref<4x8x8xf32, #tpu.memory_space<vmem>>, vector<4x8x8xf32>
      %172 = vector.broadcast %170 : vector<4x8x1xf32> to vector<4x8x8xf32>
      %173 = arith.mulf %171, %172 : vector<4x8x8xf32>
      %174 = arith.truncf %173 : vector<4x8x8xf32> to vector<4x8x8xbf16>
      %175 = vector.extract_strided_slice %174 {offsets = [0, 0, 0], sizes = [1, 8, 8], strides = [1, 1, 1]} : vector<4x8x8xbf16> to vector<1x8x8xbf16>
      %176 = vector.shape_cast %175 : vector<1x8x8xbf16> to vector<8x8xbf16>
      %c0_132 = arith.constant 0 : index
      %c0_133 = arith.constant 0 : index
      %c0_134 = arith.constant 0 : index
      %177 = vector.load %arg10[%c0_132, %c0_133, %c0_134] : memref<4x8x32xbf16, #tpu.memory_space<vmem>>, vector<1x8x32xbf16>
      %178 = vector.shape_cast %177 : vector<1x8x32xbf16> to vector<8x32xbf16>
      %cst_135 = arith.constant dense<0.000000e+00> : vector<8x32xf32>
      %179 = tpu.matmul %176, %178, %cst_135 {dimension_numbers = #tpu.dot_dimension_numbers<[1], [0], [0], [1], [0, 0, 1, 1], [], []>} : vector<8x8xbf16>, vector<8x32xbf16>, vector<8x32xf32> -> vector<8x32xf32>
      %180 = vector.extract_strided_slice %174 {offsets = [1, 0, 0], sizes = [1, 8, 8], strides = [1, 1, 1]} : vector<4x8x8xbf16> to vector<1x8x8xbf16>
      %181 = vector.shape_cast %180 : vector<1x8x8xbf16> to vector<8x8xbf16>
      %c1_136 = arith.constant 1 : index
      %c0_137 = arith.constant 0 : index
      %c0_138 = arith.constant 0 : index
      %182 = vector.load %arg10[%c1_136, %c0_137, %c0_138] : memref<4x8x32xbf16, #tpu.memory_space<vmem>>, vector<1x8x32xbf16>
      %183 = vector.shape_cast %182 : vector<1x8x32xbf16> to vector<8x32xbf16>
      %cst_139 = arith.constant dense<0.000000e+00> : vector<8x32xf32>
      %184 = tpu.matmul %181, %183, %cst_139 {dimension_numbers = #tpu.dot_dimension_numbers<[1], [0], [0], [1], [0, 0, 1, 1], [], []>} : vector<8x8xbf16>, vector<8x32xbf16>, vector<8x32xf32> -> vector<8x32xf32>
      %185 = arith.addf %179, %184 : vector<8x32xf32>
      %186 = vector.extract_strided_slice %174 {offsets = [2, 0, 0], sizes = [1, 8, 8], strides = [1, 1, 1]} : vector<4x8x8xbf16> to vector<1x8x8xbf16>
      %187 = vector.shape_cast %186 : vector<1x8x8xbf16> to vector<8x8xbf16>
      %c2_140 = arith.constant 2 : index
      %c0_141 = arith.constant 0 : index
      %c0_142 = arith.constant 0 : index
      %188 = vector.load %arg10[%c2_140, %c0_141, %c0_142] : memref<4x8x32xbf16, #tpu.memory_space<vmem>>, vector<1x8x32xbf16>
      %189 = vector.shape_cast %188 : vector<1x8x32xbf16> to vector<8x32xbf16>
      %cst_143 = arith.constant dense<0.000000e+00> : vector<8x32xf32>
      %190 = tpu.matmul %187, %189, %cst_143 {dimension_numbers = #tpu.dot_dimension_numbers<[1], [0], [0], [1], [0, 0, 1, 1], [], []>} : vector<8x8xbf16>, vector<8x32xbf16>, vector<8x32xf32> -> vector<8x32xf32>
      %191 = arith.addf %185, %190 : vector<8x32xf32>
      %192 = vector.extract_strided_slice %174 {offsets = [3, 0, 0], sizes = [1, 8, 8], strides = [1, 1, 1]} : vector<4x8x8xbf16> to vector<1x8x8xbf16>
      %193 = vector.shape_cast %192 : vector<1x8x8xbf16> to vector<8x8xbf16>
      %c3_144 = arith.constant 3 : index
      %c0_145 = arith.constant 0 : index
      %c0_146 = arith.constant 0 : index
      %194 = vector.load %arg10[%c3_144, %c0_145, %c0_146] : memref<4x8x32xbf16, #tpu.memory_space<vmem>>, vector<1x8x32xbf16>
      %195 = vector.shape_cast %194 : vector<1x8x32xbf16> to vector<8x32xbf16>
      %cst_147 = arith.constant dense<0.000000e+00> : vector<8x32xf32>
      %196 = tpu.matmul %193, %195, %cst_147 {dimension_numbers = #tpu.dot_dimension_numbers<[1], [0], [0], [1], [0, 0, 1, 1], [], []>} : vector<8x8xbf16>, vector<8x32xbf16>, vector<8x32xf32> -> vector<8x32xf32>
      %197 = arith.addf %191, %196 : vector<8x32xf32>
      %c0_148 = arith.constant 0 : index
      %c0_149 = arith.constant 0 : index
      %c0_150 = arith.constant 0 : index
      %198 = vector.load %arg11[%c0_148, %c0_149, %c0_150] : memref<1x8x32xf32, #tpu.memory_space<vmem>>, vector<1x8x32xf32>
      %199 = vector.shape_cast %198 : vector<1x8x32xf32> to vector<8x32xf32>
      %200 = vector.shape_cast %197 : vector<8x32xf32> to vector<1x8x32xf32>
      tpu.vector_store %arg11[%c0_148, %c0_149, %c0_150], %200 {strides = array<i32>} : memref<1x8x32xf32, #tpu.memory_space<vmem>>, vector<1x8x32xf32>,
    } else {
    }
    return
  }
  func.func @transform_0(%arg0: i32, %arg1: i32, %arg2: i32) -> (i32, i32, i32) {
    %c0_i32 = arith.constant 0 : i32
    %c0_i32_0 = arith.constant 0 : i32
    return %arg0, %arg1, %c0_i32 : i32, i32, i32
  }
  func.func @transform_1(%arg0: i32, %arg1: i32, %arg2: i32) -> (i32, i32, i32) {
    %c0_i32 = arith.constant 0 : i32
    %c0_i32_0 = arith.constant 0 : i32
    return %arg0, %arg2, %c0_i32 : i32, i32, i32
  }
  func.func @transform_2(%arg0: i32, %arg1: i32, %arg2: i32) -> (i32, i32, i32) {
    %c0_i32 = arith.constant 0 : i32
    %c0_i32_0 = arith.constant 0 : i32
    return %arg0, %arg2, %c0_i32 : i32, i32, i32
  }
  func.func @transform_3(%arg0: i32, %arg1: i32, %arg2: i32) -> (i32, i32, i32) {
    %c0_i32 = arith.constant 0 : i32
    return %arg0, %arg1, %arg2 : i32, i32, i32
  }
  func.func @transform_4(%arg0: i32, %arg1: i32, %arg2: i32) -> (i32, i32) {
    %c0_i32 = arith.constant 0 : i32
    %c0_i32_0 = arith.constant 0 : i32
    %c0_i32_1 = arith.constant 0 : i32
    return %c0_i32, %c0_i32_0 : i32, i32
  }
  func.func @transform_5(%arg0: i32, %arg1: i32, %arg2: i32) -> (i32, i32) {
    %c0_i32 = arith.constant 0 : i32
    %c0_i32_0 = arith.constant 0 : i32
    %c0_i32_1 = arith.constant 0 : i32
    return %c0_i32, %c0_i32_0 : i32, i32
  }
  func.func @transform_6(%arg0: i32, %arg1: i32, %arg2: i32) -> (i32, i32) {
    %c0_i32 = arith.constant 0 : i32
    %c0_i32_0 = arith.constant 0 : i32
    %c0_i32_1 = arith.constant 0 : i32
    return %c0_i32, %c0_i32_0 : i32, i32
  }
  func.func @transform_7(%arg0: i32, %arg1: i32, %arg2: i32) -> (i32, i32, i32) {
    %c0_i32 = arith.constant 0 : i32
    %c0_i32_0 = arith.constant 0 : i32
    %c0_i32_1 = arith.constant 0 : i32
    %c0_i32_2 = arith.constant 0 : i32
    return %c0_i32, %c0_i32_0, %c0_i32_1 : i32, i32, i32
  }
  func.func @transform_8(%arg0: i32, %arg1: i32, %arg2: i32) -> (i32, i32, i32) {
    %c0_i32 = arith.constant 0 : i32
    %c0_i32_0 = arith.constant 0 : i32
    return %arg0, %arg1, %c0_i32 : i32, i32, i32
  }
}

</mosaic_0001>

<llo_original>
// kernel: tpu_custom_call.1
$region0: #{tpu_custom_call.1}
  #allocation0 [shape = 'u32[]', space=smem, size = 0x4, offset = 0x4, fixed_abs, tag = 'smem constant byte address 0x4 - core index']
  #allocation1 [shape = 'u32[144,128]{1,0:T(1,128)}', space=vmem, size = 0x12000, scoped, tag = 'internal scratch']
  #allocation2 [shape = 'bf16[8,32]{1,0:T(8,128)(2,1)}', space=vmem, size = 0x800, scoped, tag = 'scratch operand']
  #allocation3 [shape = 'bf16[8,32]{1,0:T(8,128)(2,1)}', space=vmem, size = 0x800, scoped, tag = 'scratch operand']
  #allocation4 [shape = 'bf16[8,32]{1,0:T(8,128)(2,1)}', space=vmem, size = 0x800, scoped, tag = 'scratch operand']
  #allocation5 [shape = 'f32[4,8,1]{2,1,0:T(8,128)}', space=vmem, size = 0x4000, scoped, tag = 'scratch operand']
  #allocation6 [shape = 'f32[4,8,1]{2,1,0:T(8,128)}', space=vmem, size = 0x4000, scoped, tag = 'scratch operand']
  #allocation7 [shape = 'f32[4,8,8]{2,1,0:T(8,128)}', space=vmem, size = 0x4000, scoped, tag = 'scratch operand']
  %s0 = inlined_call_operand.hbm [shape: bf16[2,8,32], index: 0, kind: input, shape index: {}]
  %s1 = inlined_call_operand.hbm [shape: bf16[2,8,32], index: 1, kind: input, shape index: {}]
  %s2 = inlined_call_operand.hbm [shape: bf16[2,8,32], index: 2, kind: input, shape index: {}]
  %s3 = inlined_call_operand.hbm [shape: bf16[2,8,8], index: 3, kind: input, shape index: {}]
  %s4 = inlined_call_operand.hbm [shape: bf16[32,32], index: 4, kind: input, shape index: {}]
  %s5 = inlined_call_operand.vmem [shape: bf16[32,32], index: 5, kind: input, shape index: {}]
  %s6 = inlined_call_operand.hbm [shape: bf16[32,32], index: 6, kind: input, shape index: {}]
  %s7 = inlined_call_operand.hbm [shape: bf16[4,8,32], index: 7, kind: input, shape index: {}]
  %s8 = inlined_call_operand.hbm [shape: f32[2,8,32], index: 8, kind: output, shape index: {}]
  %s9 = sld [smem:[#allocation0]]
  $region101: #{tpu_custom_call.1} parent=0
    _
  %s11 = ssub.s32 1, %s9
  %s12 = scalar_select 0, %s11, %s9
  $region1: #{tpu_custom_call.1} parent=0
    #allocation8 [shape = 'u8[4096]{0}', space=vmem, size = 0x1000, scoped, tag = 'input window, operand 0']
    #allocation9 [shape = 's32[2]{0}', space=sflag, size = 0x8, scoped, tag = 'scoped memory for tpu_custom_call.1']
    #allocation10 [shape = 's32[2]{0}', space=sflag, size = 0x8, scoped, tag = 'scoped memory for tpu_custom_call.1']
    #allocation11 [shape = 'u8[4096]{0}', space=vmem, size = 0x1000, scoped, tag = 'input window, operand 1']
    #allocation12 [shape = 's32[2]{0}', space=sflag, size = 0x8, scoped, tag = 'scoped memory for tpu_custom_call.1']
    #allocation13 [shape = 'u8[4096]{0}', space=vmem, size = 0x1000, scoped, tag = 'input window, operand 2']
    #allocation14 [shape = 'u8[4096]{0}', space=vmem, size = 0x1000, scoped, tag = 'input window, operand 3']
    #allocation15 [shape = 's32[2]{0}', space=sflag, size = 0x8, scoped, tag = 'scoped memory for tpu_custom_call.1']
    #allocation16 [shape = 'u8[8192]{0}', space=vmem, size = 0x2000, scoped, tag = 'input window, operand 4, single buffered']
    #allocation17 [shape = 'u8[8192]{0}', space=vmem, size = 0x2000, scoped, tag = 'input window, operand 6, single buffered']
    #allocation18 [shape = 's32[1]{0}', space=sflag, size = 0x4, scoped, tag = 'scoped memory for tpu_custom_call.1']
    #allocation19 [shape = 'u8[8192]{0}', space=vmem, size = 0x2000, scoped, tag = 'input window, operand 7, single buffered']
    #allocation20 [shape = 'u8[8192]{0}', space=vmem, size = 0x2000, scoped, tag = 'output window, operand 0']
    %13 = vsyncpa [#allocation9], 0
    %s14 = scalar_lea.sflag [#allocation9], 1
    %15 = vsyncpa %s14, 0
    %16 = vsyncpa [#allocation12], 0
    %s17 = scalar_lea.sflag [#allocation12], 1
    %18 = vsyncpa %s17, 0
    %19 = vsyncpa [#allocation15], 0
    %s20 = scalar_lea.sflag [#allocation15], 1
    %21 = vsyncpa %s20, 0
    %22 = vsyncpa [#allocation18], 0
    %23 = vsyncpa [#allocation10], 0
    %s24 = scalar_lea.sflag [#allocation10], 1
    %25 = vsyncpa %s24, 0
    loop: start=0, step=1, limit=4
    $region2: #{tpu_custom_call.1} parent=1 // loop_pre_header
      _
    $region3: #{tpu_custom_call.1} parent=1 // loop_header
      %s27 = sphi 0, %s31
      %p28 = scmp.ge.s32.totalorder %s27, 4
      %s34 = sphi 0, %s53
      %s35 = sphi 0, %s49
      %s36 = sphi 0, %s45
      %s37 = sphi 0, %s34
      %s38 = sphi 0, %s35
      %s39 = sphi 0, %s36
      %s40 = sphi 0, %s37
      %s41 = sphi 0, %s38
      %s42 = sphi 0, %s39
      %s58 = sphi 0, %s60
      %s61 = sphi 0, %s58
      %s62 = sphi 0, %s61
      %s78 = sphi 0, %s62
      %s86 = sphi 0, %s88
      %s89 = sphi 0, %s86
      %s90 = sphi 0, %s89
      %s106 = sphi 0, %s90
      %s114 = sphi 0, %s116
      %s117 = sphi 0, %s114
      %s118 = sphi 0, %s117
      %s134 = sphi 0, %s118
      %s144 = sphi 0, %s146
      %s147 = sphi 0, %s144
      %s148 = sphi 0, %s147
      %s164 = sphi 0, %s148
      %s168 = sphi 0, %s168
      %s170 = sphi 0, %s168
      %s171 = sphi 0, %s170
      %s185 = sphi 0, %s171
      %s189 = sphi 0, %s189
      %s191 = sphi 0, %s189
      %s192 = sphi 0, %s191
      %s206 = sphi 0, %s192
      %s210 = sphi 0, %s210
      %s212 = sphi 0, %s210
      %s213 = sphi 0, %s212
      %s227 = sphi 0, %s213
      %s231 = sphi 0, %s231
      %s233 = sphi 0, %s231
      %s234 = sphi 0, %s233
      %s248 = sphi 0, %s234
      %s256 = sphi 0, %s258
      %s259 = sphi 0, %s256
      %s260 = sphi 0, %s259
      %s276 = sphi 0, %s260
    $region4: #{tpu_custom_call.1} parent=1 // loop_header_branch
      %30 = sbr.rel (%p28) target = $region8
    $region5: #{tpu_custom_call.1} parent=1 // loop_body
      %s32 = ssub.s32 %s27, 1
      %s33 = ssub.s32 %s27, 2
      %s43 = sadd.s32 1, %s36
      %p44 = scmp.ge.s32.totalorder %s43, 1
      %s45 = scalar_select %p44, 0, %s43
      %s46 = sadd.s32 1, %s35
      %s47 = scalar_select %p44, %s46, %s35
      %p48 = scmp.ge.s32.totalorder %s47, 1
      %s49 = scalar_select %p48, 0, %s47
      %s50 = sadd.s32 1, %s34
      %s51 = scalar_select %p48, %s50, %s34
      %p52 = scmp.ge.s32.totalorder %s51, 2
      %s53 = scalar_select %p52, 0, %s51
      %s54 = ssub.s32 %s34, %s53
      %s55 = ssub.s32 %s35, %s49
      %s56 = sor.u32 %s54, %s55
      %p57 = scmp.eq.s32.totalorder %s56, 0
      %s59 = sadd.s32 %s58, 1
      %s60 = scalar_select %p57, %s58, %s59
      %p63 = pneg %p57
      %p64 = scmp.eq.s32.totalorder %s27, 1
      %p65 = por %p63, %p64
      %p66 = scmp.ne.s32.totalorder %s58, %s61
      %p67 = scmp.eq.s32.totalorder %s27, 0
      %p68 = por %p66, %p67
      %p69 = scmp.ne.s32.totalorder %s58, %s61
      %p70 = scmp.eq.s32.totalorder %s32, 1
      %p71 = por %p69, %p70
      %p72 = scmp.ne.s32.totalorder %s61, %s62
      %p73 = scmp.eq.s32.totalorder %s32, 0
      %p74 = por %p72, %p73
      %p75 = scmp.ne.s32.totalorder %s61, %s62
      %p76 = scmp.eq.s32.totalorder %s33, 1
      %p77 = por %p75, %p76
      %p79 = scmp.ne.s32.totalorder %s62, %s78
      %p80 = scmp.eq.s32.totalorder %s33, 0
      %p81 = por %p79, %p80
      %s82 = ssub.s32 %s34, %s53
      %s83 = ssub.s32 %s36, %s45
      %s84 = sor.u32 %s82, %s83
      %p85 = scmp.eq.s32.totalorder %s84, 0
      %s87 = sadd.s32 %s86, 1
      %s88 = scalar_select %p85, %s86, %s87
      %p91 = pneg %p85
      %p92 = scmp.eq.s32.totalorder %s27, 1
      %p93 = por %p91, %p92
      %p94 = scmp.ne.s32.totalorder %s86, %s89
      %p95 = scmp.eq.s32.totalorder %s27, 0
      %p96 = por %p94, %p95
      %p97 = scmp.ne.s32.totalorder %s86, %s89
      %p98 = scmp.eq.s32.totalorder %s32, 1
      %p99 = por %p97, %p98
      %p100 = scmp.ne.s32.totalorder %s89, %s90
      %p101 = scmp.eq.s32.totalorder %s32, 0
      %p102 = por %p100, %p101
      %p103 = scmp.ne.s32.totalorder %s89, %s90
      %p104 = scmp.eq.s32.totalorder %s33, 1
      %p105 = por %p103, %p104
      %p107 = scmp.ne.s32.totalorder %s90, %s106
      %p108 = scmp.eq.s32.totalorder %s33, 0
      %p109 = por %p107, %p108
      %s110 = ssub.s32 %s34, %s53
      %s111 = ssub.s32 %s36, %s45
      %s112 = sor.u32 %s110, %s111
      %p113 = scmp.eq.s32.totalorder %s112, 0
      %s115 = sadd.s32 %s114, 1
      %s116 = scalar_select %p113, %s114, %s115
      %p119 = pneg %p113
      %p120 = scmp.eq.s32.totalorder %s27, 1
      %p121 = por %p119, %p120
      %p122 = scmp.ne.s32.totalorder %s114, %s117
      %p123 = scmp.eq.s32.totalorder %s27, 0
      %p124 = por %p122, %p123
      %p125 = scmp.ne.s32.totalorder %s114, %s117
      %p126 = scmp.eq.s32.totalorder %s32, 1
      %p127 = por %p125, %p126
      %p128 = scmp.ne.s32.totalorder %s117, %s118
      %p129 = scmp.eq.s32.totalorder %s32, 0
      %p130 = por %p128, %p129
      %p131 = scmp.ne.s32.totalorder %s117, %s118
      %p132 = scmp.eq.s32.totalorder %s33, 1
      %p133 = por %p131, %p132
      %p135 = scmp.ne.s32.totalorder %s118, %s134
      %p136 = scmp.eq.s32.totalorder %s33, 0
      %p137 = por %p135, %p136
      %s138 = ssub.s32 %s34, %s53
      %s139 = ssub.s32 %s35, %s49
      %s140 = sor.u32 %s138, %s139
      %s141 = ssub.s32 %s36, %s45
      %s142 = sor.u32 %s140, %s141
      %p143 = scmp.eq.s32.totalorder %s142, 0
      %s145 = sadd.s32 %s144, 1
      %s146 = scalar_select %p143, %s144, %s145
      %p149 = pneg %p143
      %p150 = scmp.eq.s32.totalorder %s27, 1
      %p151 = por %p149, %p150
      %p152 = scmp.ne.s32.totalorder %s144, %s147
      %p153 = scmp.eq.s32.totalorder %s27, 0
      %p154 = por %p152, %p153
      %p155 = scmp.ne.s32.totalorder %s144, %s147
      %p156 = scmp.eq.s32.totalorder %s32, 1
      %p157 = por %p155, %p156
      %p158 = scmp.ne.s32.totalorder %s147, %s148
      %p159 = scmp.eq.s32.totalorder %s32, 0
      %p160 = por %p158, %p159
      %p161 = scmp.ne.s32.totalorder %s147, %s148
      %p162 = scmp.eq.s32.totalorder %s33, 1
      %p163 = por %p161, %p162
      %p165 = scmp.ne.s32.totalorder %s148, %s164
      %p166 = scmp.eq.s32.totalorder %s33, 0
      %p167 = por %p165, %p166
      %s169 = sadd.s32 %s168, 1
      %p172 = scmp.eq.s32.totalorder %s27, 1
      %p173 = scmp.ne.s32.totalorder %s168, %s170
      %p174 = scmp.eq.s32.totalorder %s27, 0
      %p175 = por %p173, %p174
      %p176 = scmp.ne.s32.totalorder %s168, %s170
      %p177 = scmp.eq.s32.totalorder %s32, 1
      %p178 = por %p176, %p177
      %p179 = scmp.ne.s32.totalorder %s170, %s171
      %p180 = scmp.eq.s32.totalorder %s32, 0
      %p181 = por %p179, %p180
      %p182 = scmp.ne.s32.totalorder %s170, %s171
      %p183 = scmp.eq.s32.totalorder %s33, 1
      %p184 = por %p182, %p183
      %p186 = scmp.ne.s32.totalorder %s171, %s185
      %p187 = scmp.eq.s32.totalorder %s33, 0
      %p188 = por %p186, %p187
      %s190 = sadd.s32 %s189, 1
      %p193 = scmp.eq.s32.totalorder %s27, 1
      %p194 = scmp.ne.s32.totalorder %s189, %s191
      %p195 = scmp.eq.s32.totalorder %s27, 0
      %p196 = por %p194, %p195
      %p197 = scmp.ne.s32.totalorder %s189, %s191
      %p198 = scmp.eq.s32.totalorder %s32, 1
      %p199 = por %p197, %p198
      %p200 = scmp.ne.s32.totalorder %s191, %s192
      %p201 = scmp.eq.s32.totalorder %s32, 0
      %p202 = por %p200, %p201
      %p203 = scmp.ne.s32.totalorder %s191, %s192
      %p204 = scmp.eq.s32.totalorder %s33, 1
      %p205 = por %p203, %p204
      %p207 = scmp.ne.s32.totalorder %s192, %s206
      %p208 = scmp.eq.s32.totalorder %s33, 0
      %p209 = por %p207, %p208
      %s211 = sadd.s32 %s210, 1
      %p214 = scmp.eq.s32.totalorder %s27, 1
      %p215 = scmp.ne.s32.totalorder %s210, %s212
      %p216 = scmp.eq.s32.totalorder %s27, 0
      %p217 = por %p215, %p216
      %p218 = scmp.ne.s32.totalorder %s210, %s212
      %p219 = scmp.eq.s32.totalorder %s32, 1
      %p220 = por %p218, %p219
      %p221 = scmp.ne.s32.totalorder %s212, %s213
      %p222 = scmp.eq.s32.totalorder %s32, 0
      %p223 = por %p221, %p222
      %p224 = scmp.ne.s32.totalorder %s212, %s213
      %p225 = scmp.eq.s32.totalorder %s33, 1
      %p226 = por %p224, %p225
      %p228 = scmp.ne.s32.totalorder %s213, %s227
      %p229 = scmp.eq.s32.totalorder %s33, 0
      %p230 = por %p228, %p229
      %s232 = sadd.s32 %s231, 1
      %p235 = scmp.eq.s32.totalorder %s27, 1
      %p236 = scmp.ne.s32.totalorder %s231, %s233
      %p237 = scmp.eq.s32.totalorder %s27, 0
      %p238 = por %p236, %p237
      %p239 = scmp.ne.s32.totalorder %s231, %s233
      %p240 = scmp.eq.s32.totalorder %s32, 1
      %p241 = por %p239, %p240
      %p242 = scmp.ne.s32.totalorder %s233, %s234
      %p243 = scmp.eq.s32.totalorder %s32, 0
      %p244 = por %p242, %p243
      %p245 = scmp.ne.s32.totalorder %s233, %s234
      %p246 = scmp.eq.s32.totalorder %s33, 1
      %p247 = por %p245, %p246
      %p249 = scmp.ne.s32.totalorder %s234, %s248
      %p250 = scmp.eq.s32.totalorder %s33, 0
      %p251 = por %p249, %p250
      %s252 = ssub.s32 %s34, %s53
      %s253 = ssub.s32 %s35, %s49
      %s254 = sor.u32 %s252, %s253
      %p255 = scmp.eq.s32.totalorder %s254, 0
      %s257 = sadd.s32 %s256, 1
      %s258 = scalar_select %p255, %s256, %s257
      %p261 = pneg %p255
      %p262 = scmp.eq.s32.totalorder %s27, 1
      %p263 = por %p261, %p262
      %p264 = scmp.ne.s32.totalorder %s256, %s259
      %p265 = scmp.eq.s32.totalorder %s27, 0
      %p266 = por %p264, %p265
      %p267 = scmp.ne.s32.totalorder %s256, %s259
      %p268 = scmp.eq.s32.totalorder %s32, 1
      %p269 = por %p267, %p268
      %p270 = scmp.ne.s32.totalorder %s259, %s260
      %p271 = scmp.eq.s32.totalorder %s32, 0
      %p272 = por %p270, %p271
      %p273 = scmp.ne.s32.totalorder %s259, %s260
      %p274 = scmp.eq.s32.totalorder %s33, 1
      %p275 = por %p273, %p274
      %p277 = scmp.ne.s32.totalorder %s260, %s276
      %p278 = scmp.eq.s32.totalorder %s33, 0
      %p279 = por %p277, %p278
      %p280 = scmp.le.s32.totalorder 1, %s27
      %p281 = scmp.lt.s32.totalorder %s27, 3
      %p282 = pnand %p280, %p281
      %p283 = pneg %p282
      // Predicated region
      $region9: #{tpu_custom_call.1} parent=5 // pred_check
        _
      $region10: #{tpu_custom_call.1} parent=5 // pred_check_branch
        %285 = sbr.rel (%p282) target = $region12
      $region11: #{tpu_custom_call.1} parent=5 // pred_region
        %s286 = ssub.s32 %s27, 1
        // Predicated region
        $region13: #{tpu_custom_call.1} parent=11 // pred_check
          %p287 = pneg %p181
        $region14: #{tpu_custom_call.1} parent=11 // pred_check_branch
          %289 = sbr.rel (%p287) target = $region16
        $region15: #{tpu_custom_call.1} parent=11 // pred_region
          %s291 = ssub.s32 256, 256
          %292 = vsyncadd [#allocation15], %s291
          %s293 = sshll.u32 [#allocation16], 4
          %s294 = int_to_ptr.vmem [resolvable:$true] %s293
          %299 = dma.hbm_to_vmem [thread:$0]  %s4, 256, %s294, [#allocation15], 64, 64, 4
        $region16: #{tpu_custom_call.1} parent=11 // pred_fallthru
          _
        // Predicated region
        $region17: #{tpu_custom_call.1} parent=11 // pred_check
          %p300 = pneg %p202
        $region18: #{tpu_custom_call.1} parent=11 // pred_check_branch
          %302 = sbr.rel (%p300) target = $region20
        $region19: #{tpu_custom_call.1} parent=11 // pred_region
          _
        $region20: #{tpu_custom_call.1} parent=11 // pred_fallthru
          _
        // Predicated region
        $region21: #{tpu_custom_call.1} parent=11 // pred_check
          %p303 = pneg %p223
        $region22: #{tpu_custom_call.1} parent=11 // pred_check_branch
          %305 = sbr.rel (%p303) target = $region24
        $region23: #{tpu_custom_call.1} parent=11 // pred_region
          %s307 = ssub.s32 256, 256
          %308 = vsyncadd [#allocation18], %s307
          %s309 = sshll.u32 [#allocation17], 4
          %s310 = int_to_ptr.vmem [resolvable:$true] %s309
          %315 = dma.hbm_to_vmem [thread:$0]  %s6, 256, %s310, [#allocation18], 64, 64, 4
        $region24: #{tpu_custom_call.1} parent=11 // pred_fallthru
          _
        // Predicated region
        $region25: #{tpu_custom_call.1} parent=11 // pred_check
          %p316 = pneg %p244
        $region26: #{tpu_custom_call.1} parent=11 // pred_check_branch
          %318 = sbr.rel (%p316) target = $region28
        $region27: #{tpu_custom_call.1} parent=11 // pred_region
          %s320 = ssub.s32 256, 256
          %321 = vsyncadd [#allocation18], %s320
          %s322 = sshll.u32 [#allocation19], 4
          %s323 = int_to_ptr.vmem [resolvable:$true] %s322
          %328 = dma.hbm_to_vmem [thread:$0]  %s7, 256, %s323, [#allocation18], 64, 64, 4
        $region28: #{tpu_custom_call.1} parent=11 // pred_fallthru
          _
      $region12: #{tpu_custom_call.1} parent=5 // pred_fallthru
        _
      %p329 = scmp.lt.s32.totalorder %s27, 2
      // Predicated region
      $region29: #{tpu_custom_call.1} parent=5 // pred_check
        %p330 = pneg %p329
      $region30: #{tpu_custom_call.1} parent=5 // pred_check_branch
        %332 = sbr.rel (%p330) target = $region32
      $region31: #{tpu_custom_call.1} parent=5 // pred_region
        // Predicated region
        $region33: #{tpu_custom_call.1} parent=31 // pred_check
          %p333 = pneg %p68
        $region34: #{tpu_custom_call.1} parent=31 // pred_check_branch
          %335 = sbr.rel (%p333) target = $region36
        $region35: #{tpu_custom_call.1} parent=31 // pred_region
          %s336 = sand.u32 %s58, 1
          %s337 = scalar_lea.sflag [#allocation9], %s336
          %s338 = sand.u32 %s58, 1
          %s339 = smul.addr %s338, 4
          %s340 = scalar_lea.vmem [#allocation8], %s339
          %s342 = ssub.s32 64, 64
          %343 = vsyncadd %s337, %s342
          %s344 = sadd.s32 %s35, %s34
          %s345 = smul.addr %s344, 64
          %s346 = scalar_lea.hbm %s0, %s345
          %s348 = sshll.u32 %s340, 4
          %s349 = int_to_ptr.vmem [resolvable:$true] %s348
          %351 = dma.hbm_to_vmem [thread:$0]  %s346, 64, %s349, %s337
        $region36: #{tpu_custom_call.1} parent=31 // pred_fallthru
          _
        // Predicated region
        $region37: #{tpu_custom_call.1} parent=31 // pred_check
          %p352 = pneg %p96
        $region38: #{tpu_custom_call.1} parent=31 // pred_check_branch
          %354 = sbr.rel (%p352) target = $region40
        $region39: #{tpu_custom_call.1} parent=31 // pred_region
          %s355 = sand.u32 %s27, 1
          %s356 = scalar_lea.sflag [#allocation12], %s355
          %s357 = sand.u32 %s86, 1
          %s358 = smul.addr %s357, 4
          %s359 = scalar_lea.vmem [#allocation11], %s358
          %s361 = ssub.s32 64, 64
          %362 = vsyncadd %s356, %s361
          %s363 = sadd.s32 %s36, %s34
          %s364 = smul.addr %s363, 64
          %s365 = scalar_lea.hbm %s1, %s364
          %s367 = sshll.u32 %s359, 4
          %s368 = int_to_ptr.vmem [resolvable:$true] %s367
          %370 = dma.hbm_to_vmem [thread:$0]  %s365, 64, %s368, %s356
        $region40: #{tpu_custom_call.1} parent=31 // pred_fallthru
          _
        // Predicated region
        $region41: #{tpu_custom_call.1} parent=31 // pred_check
          %p371 = pneg %p124
        $region42: #{tpu_custom_call.1} parent=31 // pred_check_branch
          %373 = sbr.rel (%p371) target = $region44
        $region43: #{tpu_custom_call.1} parent=31 // pred_region
          %s374 = sand.u32 %s27, 1
          %s375 = scalar_lea.sflag [#allocation12], %s374
          %s376 = sand.u32 %s114, 1
          %s377 = smul.addr %s376, 4
          %s378 = scalar_lea.vmem [#allocation13], %s377
          %s380 = ssub.s32 64, 64
          %381 = vsyncadd %s375, %s380
          %s382 = sadd.s32 %s36, %s34
          %s383 = smul.addr %s382, 64
          %s384 = scalar_lea.hbm %s2, %s383
          %s386 = sshll.u32 %s378, 4
          %s387 = int_to_ptr.vmem [resolvable:$true] %s386
          %389 = dma.hbm_to_vmem [thread:$0]  %s384, 64, %s387, %s375
        $region44: #{tpu_custom_call.1} parent=31 // pred_fallthru
          _
        // Predicated region
        $region45: #{tpu_custom_call.1} parent=31 // pred_check
          %p390 = pneg %p154
        $region46: #{tpu_custom_call.1} parent=31 // pred_check_branch
          %392 = sbr.rel (%p390) target = $region48
        $region47: #{tpu_custom_call.1} parent=31 // pred_region
          %s393 = sand.u32 %s27, 1
          %s394 = scalar_lea.sflag [#allocation15], %s393
          %s395 = sand.u32 %s144, 1
          %s396 = smul.addr %s395, 4
          %s397 = scalar_lea.vmem [#allocation14], %s396
          %s399 = ssub.s32 64, 64
          %400 = vsyncadd %s394, %s399
          %s401 = sadd.s32 %s36, %s35
          %s402 = sadd.s32 %s401, %s34
          %s403 = smul.addr %s402, 64
          %s404 = scalar_lea.hbm %s3, %s403
          %s406 = sshll.u32 %s397, 4
          %s407 = int_to_ptr.vmem [resolvable:$true] %s406
          %409 = dma.hbm_to_vmem [thread:$0]  %s404, 64, %s407, %s394
        $region48: #{tpu_custom_call.1} parent=31 // pred_fallthru
          _
      $region32: #{tpu_custom_call.1} parent=5 // pred_fallthru
        _
      %p410 = scmp.le.s32.totalorder 1, %s27
      %p411 = scmp.lt.s32.totalorder %s27, 3
      %p412 = pnand %p410, %p411
      %p413 = pneg %p412
      // Predicated region
      $region49: #{tpu_custom_call.1} parent=5 // pred_check
        _
      $region50: #{tpu_custom_call.1} parent=5 // pred_check_branch
        %415 = sbr.rel (%p412) target = $region52
      $region51: #{tpu_custom_call.1} parent=5 // pred_region
        %s416 = ssub.s32 %s27, 1
        %s417 = sand.u32 %s61, 1
        %s418 = scalar_lea.sflag [#allocation9], %s417
        %s419 = sand.u32 %s61, 1
        %s420 = smul.addr %s419, 4
        %s421 = scalar_lea.vmem [#allocation8], %s420
        // Predicated region
        $region53: #{tpu_custom_call.1} parent=51 // pred_check
          %p422 = pneg %p74
        $region54: #{tpu_custom_call.1} parent=51 // pred_check_branch
          %424 = sbr.rel (%p422) target = $region56
        $region55: #{tpu_custom_call.1} parent=51 // pred_region
          %425 = dma.done %s418, 64
        $region56: #{tpu_custom_call.1} parent=51 // pred_fallthru
          _
        %s426 = sand.u32 %s32, 1
        %s427 = scalar_lea.sflag [#allocation12], %s426
        %s428 = sand.u32 %s89, 1
        %s429 = smul.addr %s428, 4
        %s430 = scalar_lea.vmem [#allocation11], %s429
        // Predicated region
        $region57: #{tpu_custom_call.1} parent=51 // pred_check
          %p431 = pneg %p102
        $region58: #{tpu_custom_call.1} parent=51 // pred_check_branch
          %433 = sbr.rel (%p431) target = $region60
        $region59: #{tpu_custom_call.1} parent=51 // pred_region
          %434 = dma.done %s427, 64
        $region60: #{tpu_custom_call.1} parent=51 // pred_fallthru
          _
        %s435 = sand.u32 %s32, 1
        %s436 = scalar_lea.sflag [#allocation12], %s435
        %s437 = sand.u32 %s117, 1
        %s438 = smul.addr %s437, 4
        %s439 = scalar_lea.vmem [#allocation13], %s438
        // Predicated region
        $region61: #{tpu_custom_call.1} parent=51 // pred_check
          %p440 = pneg %p130
        $region62: #{tpu_custom_call.1} parent=51 // pred_check_branch
          %442 = sbr.rel (%p440) target = $region64
        $region63: #{tpu_custom_call.1} parent=51 // pred_region
          %443 = dma.done %s436, 64
        $region64: #{tpu_custom_call.1} parent=51 // pred_fallthru
          _
        %s444 = sand.u32 %s32, 1
        %s445 = scalar_lea.sflag [#allocation15], %s444
        %s446 = sand.u32 %s147, 1
        %s447 = smul.addr %s446, 4
        %s448 = scalar_lea.vmem [#allocation14], %s447
        // Predicated region
        $region65: #{tpu_custom_call.1} parent=51 // pred_check
          %p449 = pneg %p160
        $region66: #{tpu_custom_call.1} parent=51 // pred_check_branch
          %451 = sbr.rel (%p449) target = $region68
        $region67: #{tpu_custom_call.1} parent=51 // pred_region
          %452 = dma.done %s445, 64
        $region68: #{tpu_custom_call.1} parent=51 // pred_fallthru
          _
        // Predicated region
        $region69: #{tpu_custom_call.1} parent=51 // pred_check
          %p453 = pneg %p181
        $region70: #{tpu_custom_call.1} parent=51 // pred_check_branch
          %455 = sbr.rel (%p453) target = $region72
        $region71: #{tpu_custom_call.1} parent=51 // pred_region
          %456 = dma.done [#allocation15], 256
        $region72: #{tpu_custom_call.1} parent=51 // pred_fallthru
          _
        // Predicated region
        $region73: #{tpu_custom_call.1} parent=51 // pred_check
          %p457 = pneg %p223
        $region74: #{tpu_custom_call.1} parent=51 // pred_check_branch
          %459 = sbr.rel (%p457) target = $region76
        $region75: #{tpu_custom_call.1} parent=51 // pred_region
          %460 = dma.done [#allocation18], 256
        $region76: #{tpu_custom_call.1} parent=51 // pred_fallthru
          _
        // Predicated region
        $region77: #{tpu_custom_call.1} parent=51 // pred_check
          %p461 = pneg %p244
        $region78: #{tpu_custom_call.1} parent=51 // pred_check_branch
          %463 = sbr.rel (%p461) target = $region80
        $region79: #{tpu_custom_call.1} parent=51 // pred_region
          %464 = dma.done [#allocation18], 256
        $region80: #{tpu_custom_call.1} parent=51 // pred_fallthru
          _
        %s465 = sand.u32 %s61, 1
        %s466 = scalar_lea.sflag [#allocation9], %s465
        %s467 = sand.u32 %s61, 1
        %s468 = smul.addr %s467, 4
        %s469 = scalar_lea.vmem [#allocation8], %s468
        %p470 = pneg %p74
        %p471 = pneg %p71
        %s472 = sand.u32 %s32, 1
        %s473 = scalar_lea.sflag [#allocation12], %s472
        %s474 = sand.u32 %s89, 1
        %s475 = smul.addr %s474, 4
        %s476 = scalar_lea.vmem [#allocation11], %s475
        %p477 = pneg %p102
        %p478 = pneg %p99
        %s479 = sand.u32 %s32, 1
        %s480 = scalar_lea.sflag [#allocation12], %s479
        %s481 = sand.u32 %s117, 1
        %s482 = smul.addr %s481, 4
        %s483 = scalar_lea.vmem [#allocation13], %s482
        %p484 = pneg %p130
        %p485 = pneg %p127
        %s486 = sand.u32 %s32, 1
        %s487 = scalar_lea.sflag [#allocation15], %s486
        %s488 = sand.u32 %s147, 1
        %s489 = smul.addr %s488, 4
        %s490 = scalar_lea.vmem [#allocation14], %s489
        %p491 = pneg %p160
        %p492 = pneg %p157
        %p493 = pneg %p181
        %p494 = pneg %p178
        %p495 = pneg %p202
        %p496 = pneg %p199
        %p497 = pneg %p223
        %p498 = pneg %p220
        %p499 = pneg %p244
        %p500 = pneg %p241
        %p501 = pneg %p272
        %p502 = pneg %p269
        %s503 = sand.u32 %s259, 1
        %s504 = scalar_lea.sflag [#allocation10], %s503
        %s505 = sand.u32 %s259, 1
        %s506 = smul.addr %s505, 8
        %s507 = scalar_lea.vmem [#allocation20], %s506
        %p509 = scmp.eq.s32.totalorder %s39, 0
        // Predicated region
        $region81: #{tpu_custom_call.1} parent=51 // pred_check
          %p510 = pneg %p509
        $region82: #{tpu_custom_call.1} parent=51 // pred_check_branch
          %512 = sbr.rel (%p510) target = $region84
        $region83: #{tpu_custom_call.1} parent=51 // pred_region
          %v513 = vld [vmem:[%s421] sm:$0xf]
          %v514 = vld [vmem:[#allocation16] sm:$0xf]
          %v515 = vld [vmem:[#allocation16 + $0x4] sm:$0xf]
          %v516 = vld [vmem:[#allocation16 + $0x8] sm:$0xf]
          %v517 = vld [vmem:[#allocation16 + $0xc] sm:$0xf]
          %v522 = vunpack.c.l.b16 %v514
          %v523 = vunpack.c.l.b16 %v515
          %v524 = vunpack.c.l.b16 %v516
          %v525 = vunpack.c.l.b16 %v517
          %v526 = vpack.c.b16 %v523, %v522
          %v527 = vpack.c.b16 %v525, %v524
          %vm530 = vcmask 261120
          %v532 = vsel %vm530, %v513, 0
          %534 = vmatprep.subr.bf16.mxu0 0
          %535 = vmatpush1.bf16.msra.mxu0 %v526
          %536 = vmatprep.subr.bf16.mxu0 0
          %537 = vmatpush1.bf16.msra.mxu0 %v527
          %538 = vmatprep.subr.bf16.mxu0 0
          %539 = vmatpush1.bf16.msra.mxu0 0
          %540 = vmatprep.subr.bf16.mxu0 0
          %541 = vmatpush1.bf16.msra.mxu0 0
          %542 = vmatprep.subr.bf16.mxu0 0
          %543 = vmatpush1.bf16.msra.mxu0 0
          %544 = vmatprep.subr.bf16.mxu0 0
          %545 = vmatpush1.bf16.msra.mxu0 0
          %546 = vmatprep.subr.bf16.mxu0 0
          %547 = vmatpush1.bf16.msra.mxu0 0
          %548 = vmatprep.subr.bf16.mxu0 0
          %549 = vmatpush1.bf16.msra.mxu0 0
          %550 = vmatprep.subr.bf16.mxu0 0
          %551 = vmatpush1.bf16.msra.mxu0 0
          %552 = vmatprep.subr.bf16.mxu0 0
          %553 = vmatpush1.bf16.msra.mxu0 0
          %554 = vmatprep.subr.bf16.mxu0 0
          %555 = vmatpush1.bf16.msra.mxu0 0
          %556 = vmatprep.subr.bf16.mxu0 0
          %557 = vmatpush1.bf16.msra.mxu0 0
          %558 = vmatprep.subr.bf16.mxu0 0
          %559 = vmatpush1.bf16.msra.mxu0 0
          %560 = vmatprep.subr.bf16.mxu0 0
          %561 = vmatpush1.bf16.msra.mxu0 0
          %562 = vmatprep.subr.bf16.mxu0 0
          %563 = vmatpush1.bf16.msra.mxu0 0
          %564 = vmatprep.subr.bf16.mxu0 0
          %565 = vmatpush1.bf16.msra.mxu0 0
          %566 = vmatprep.mubr.bf16.mxu0 0
          %567 = vmatmul.mubr.bf16.gmra.mrb[0].mxu0 %v532
          %v568 = vpop.f32.mrb[0].mxu0
          %v569 = vadd.f32 0.0, %v568
          %v570 = vpop.f32.mrb[0].mxu0
          %v571 = vpop.f32.mrb[0].mxu0
          %v572 = vpop.f32.mrb[0].mxu0
          %573 = vdwg.mxu0
          %v574 = vmul.f32 %v569, 0.35355338
          %v575 = vpack.c.bf16 %v574, %v574
          %vm576 = vcmask 257024
          %577 = vst.msk [vmem:[#allocation2] sm:$0xf] %vm576, %v575
          %vm578 = vcmask 7168
          %579 = vst.msk [vmem:[#allocation5] sm:$0xff] %vm578, -inf
          %580 = vst.msk [vmem:[#allocation5 + $0x8] sm:$0xff] %vm578, -inf
          %581 = vst.msk [vmem:[#allocation5 + $0x10] sm:$0xff] %vm578, -inf
          %582 = vst.msk [vmem:[#allocation5 + $0x18] sm:$0xff] %vm578, -inf
          %583 = vst.msk [vmem:[#allocation6] sm:$0xff] %vm578, 0.0
          %584 = vst.msk [vmem:[#allocation6 + $0x8] sm:$0xff] %vm578, 0.0
          %585 = vst.msk [vmem:[#allocation6 + $0x10] sm:$0xff] %vm578, 0.0
          %586 = vst.msk [vmem:[#allocation6 + $0x18] sm:$0xff] %vm578, 0.0
          %vm587 = vcmask 64512
          %588 = vst.msk [vmem:[#allocation7] sm:$0xff] %vm587, 0.0
          %589 = vst.msk [vmem:[#allocation7 + $0x8] sm:$0xff] %vm587, 0.0
          %590 = vst.msk [vmem:[#allocation7 + $0x10] sm:$0xff] %vm587, 0.0
          %591 = vst.msk [vmem:[#allocation7 + $0x18] sm:$0xff] %vm587, 0.0
        $region84: #{tpu_custom_call.1} parent=51 // pred_fallthru
          _
        %v592 = vld [vmem:[%s430] sm:$0xf]
        %v593 = vld [vmem:[%s5] sm:$0xf]
        %v594 = vld [vmem:[%s5 + $0x4] sm:$0xf]
        %v595 = vld [vmem:[%s5 + $0x8] sm:$0xf]
        %v596 = vld [vmem:[%s5 + $0xc] sm:$0xf]
        %v601 = vunpack.c.l.b16 %v593
        %v602 = vunpack.c.l.b16 %v594
        %v603 = vunpack.c.l.b16 %v595
        %v604 = vunpack.c.l.b16 %v596
        %v605 = vpack.c.b16 %v602, %v601
        %v606 = vpack.c.b16 %v604, %v603
        %vm609 = vcmask 261120
        %v611 = vsel %vm609, %v592, 0
        %613 = vmatprep.subr.bf16.mxu0 0
        %614 = vmatpush1.bf16.msra.mxu0 %v605
        %615 = vmatprep.subr.bf16.mxu0 0
        %616 = vmatpush1.bf16.msra.mxu0 %v606
        %617 = vmatprep.subr.bf16.mxu0 0
        %618 = vmatpush1.bf16.msra.mxu0 0
        %619 = vmatprep.subr.bf16.mxu0 0
        %620 = vmatpush1.bf16.msra.mxu0 0
        %621 = vmatprep.subr.bf16.mxu0 0
        %622 = vmatpush1.bf16.msra.mxu0 0
        %623 = vmatprep.subr.bf16.mxu0 0
        %624 = vmatpush1.bf16.msra.mxu0 0
        %625 = vmatprep.subr.bf16.mxu0 0
        %626 = vmatpush1.bf16.msra.mxu0 0
        %627 = vmatprep.subr.bf16.mxu0 0
        %628 = vmatpush1.bf16.msra.mxu0 0
        %629 = vmatprep.subr.bf16.mxu0 0
        %630 = vmatpush1.bf16.msra.mxu0 0
        %631 = vmatprep.subr.bf16.mxu0 0
        %632 = vmatpush1.bf16.msra.mxu0 0
        %633 = vmatprep.subr.bf16.mxu0 0
        %634 = vmatpush1.bf16.msra.mxu0 0
        %635 = vmatprep.subr.bf16.mxu0 0
        %636 = vmatpush1.bf16.msra.mxu0 0
        %637 = vmatprep.subr.bf16.mxu0 0
        %638 = vmatpush1.bf16.msra.mxu0 0
        %639 = vmatprep.subr.bf16.mxu0 0
        %640 = vmatpush1.bf16.msra.mxu0 0
        %641 = vmatprep.subr.bf16.mxu0 0
        %642 = vmatpush1.bf16.msra.mxu0 0
        %643 = vmatprep.subr.bf16.mxu0 0
        %644 = vmatpush1.bf16.msra.mxu0 0
        %645 = vmatprep.mubr.bf16.mxu0 0
        %646 = vmatmul.mubr.bf16.gmra.mrb[0].mxu0 %v611
        %v647 = vpop.f32.mrb[0].mxu0
        %v648 = vadd.f32 0.0, %v647
        %v649 = vpop.f32.mrb[0].mxu0
        %v650 = vpop.f32.mrb[0].mxu0
        %v651 = vpop.f32.mrb[0].mxu0
        %652 = vdwg.mxu0
        %v653 = vpack.c.bf16 %v648, %v648
        %vm654 = vcmask 257024
        %655 = vst.msk [vmem:[#allocation3] sm:$0xf] %vm654, %v653
        %v656 = vld [vmem:[%s439] sm:$0xf]
        %v657 = vld [vmem:[#allocation17] sm:$0xf]
        %v658 = vld [vmem:[#allocation17 + $0x4] sm:$0xf]
        %v659 = vld [vmem:[#allocation17 + $0x8] sm:$0xf]
        %v660 = vld [vmem:[#allocation17 + $0xc] sm:$0xf]
        %v665 = vunpack.c.l.b16 %v657
        %v666 = vunpack.c.l.b16 %v658
        %v667 = vunpack.c.l.b16 %v659
        %v668 = vunpack.c.l.b16 %v660
        %v669 = vpack.c.b16 %v666, %v665
        %v670 = vpack.c.b16 %v668, %v667
        %v674 = vsel %vm609, %v656, 0
        %676 = vmatprep.subr.bf16.mxu0 0
        %677 = vmatpush1.bf16.msra.mxu0 %v669
        %678 = vmatprep.subr.bf16.mxu0 0
        %679 = vmatpush1.bf16.msra.mxu0 %v670
        %680 = vmatprep.subr.bf16.mxu0 0
        %681 = vmatpush1.bf16.msra.mxu0 0
        %682 = vmatprep.subr.bf16.mxu0 0
        %683 = vmatpush1.bf16.msra.mxu0 0
        %684 = vmatprep.subr.bf16.mxu0 0
        %685 = vmatpush1.bf16.msra.mxu0 0
        %686 = vmatprep.subr.bf16.mxu0 0
        %687 = vmatpush1.bf16.msra.mxu0 0
        %688 = vmatprep.subr.bf16.mxu0 0
        %689 = vmatpush1.bf16.msra.mxu0 0
        %690 = vmatprep.subr.bf16.mxu0 0
        %691 = vmatpush1.bf16.msra.mxu0 0
        %692 = vmatprep.subr.bf16.mxu0 0
        %693 = vmatpush1.bf16.msra.mxu0 0
        %694 = vmatprep.subr.bf16.mxu0 0
        %695 = vmatpush1.bf16.msra.mxu0 0
        %696 = vmatprep.subr.bf16.mxu0 0
        %697 = vmatpush1.bf16.msra.mxu0 0
        %698 = vmatprep.subr.bf16.mxu0 0
        %699 = vmatpush1.bf16.msra.mxu0 0
        %700 = vmatprep.subr.bf16.mxu0 0
        %701 = vmatpush1.bf16.msra.mxu0 0
        %702 = vmatprep.subr.bf16.mxu0 0
        %703 = vmatpush1.bf16.msra.mxu0 0
        %704 = vmatprep.subr.bf16.mxu0 0
        %705 = vmatpush1.bf16.msra.mxu0 0
        %706 = vmatprep.subr.bf16.mxu0 0
        %707 = vmatpush1.bf16.msra.mxu0 0
        %708 = vmatprep.mubr.bf16.mxu0 0
        %709 = vmatmul.mubr.bf16.gmra.mrb[0].mxu0 %v674
        %v710 = vpop.f32.mrb[0].mxu0
        %v711 = vadd.f32 0.0, %v710
        %v712 = vpop.f32.mrb[0].mxu0
        %v713 = vpop.f32.mrb[0].mxu0
        %v714 = vpop.f32.mrb[0].mxu0
        %715 = vdwg.mxu0
        %v716 = vpack.c.bf16 %v711, %v711
        %717 = vst.msk [vmem:[#allocation4] sm:$0xf] %vm654, %v716
        %v718 = vld [vmem:[%s448] sm:$0xf]
        %v719 = vunpack.c.l.bf16 %v718
        %v720 = vld [vmem:[#allocation2] sm:$0xf]
        %v721 = vld [vmem:[#allocation3] sm:$0xf]
        %v722 = vld [vmem:[#allocation4] sm:$0xf]
        %vm723 = vcmask 64512
        %v725 = vsel %vm723, %v720, 0
        %v728 = vsel %vm723, %v721, 0
        %730 = vmatprep.subr.bf16.mxu0 0
        %731 = vmatpush1.bf16.xpose.msra.mxu0 %v728
        %732 = vmatprep.subr.bf16.mxu0 0
        %733 = vmatpush1.bf16.xpose.msra.mxu0 0
        %734 = vmatprep.subr.bf16.mxu0 0
        %735 = vmatpush1.bf16.xpose.msra.mxu0 0
        %736 = vmatprep.subr.bf16.mxu0 0
        %737 = vmatpush1.bf16.xpose.msra.mxu0 0
        %738 = vmatprep.subr.bf16.mxu0 0
        %739 = vmatpush1.bf16.xpose.msra.mxu0 0
        %740 = vmatprep.subr.bf16.mxu0 0
        %741 = vmatpush1.bf16.xpose.msra.mxu0 0
        %742 = vmatprep.subr.bf16.mxu0 0
        %743 = vmatpush1.bf16.xpose.msra.mxu0 0
        %744 = vmatprep.subr.bf16.mxu0 0
        %745 = vmatpush1.bf16.xpose.msra.mxu0 0
        %746 = vmatprep.subr.bf16.mxu0 0
        %747 = vmatpush1.bf16.xpose.msra.mxu0 0
        %748 = vmatprep.subr.bf16.mxu0 0
        %749 = vmatpush1.bf16.xpose.msra.mxu0 0
        %750 = vmatprep.subr.bf16.mxu0 0
        %751 = vmatpush1.bf16.xpose.msra.mxu0 0
        %752 = vmatprep.subr.bf16.mxu0 0
        %753 = vmatpush1.bf16.xpose.msra.mxu0 0
        %754 = vmatprep.subr.bf16.mxu0 0
        %755 = vmatpush1.bf16.xpose.msra.mxu0 0
        %756 = vmatprep.subr.bf16.mxu0 0
        %757 = vmatpush1.bf16.xpose.msra.mxu0 0
        %758 = vmatprep.subr.bf16.mxu0 0
        %759 = vmatpush1.bf16.xpose.msra.mxu0 0
        %760 = vmatprep.subr.bf16.mxu0 0
        %761 = vmatpush1.bf16.xpose.msra.mxu0 0
        %762 = vmatprep.mubr.bf16.mxu0 0
        %763 = vmatmul.mubr.bf16.gmra.mrb[0].mxu0 %v725
        %v764 = vpop.f32.mrb[0].mxu0
        %v765 = vadd.f32 %v719, %v764
        %v766 = vpop.f32.mrb[0].mxu0
        %v767 = vpop.f32.mrb[0].mxu0
        %v768 = vpop.f32.mrb[0].mxu0
        %769 = vdwg.mxu0
        %v770 = vld [vmem:[#allocation5] sm:$0xff]
        %v771 = vsel %vm723, %v765, -inf
        %772 = vmax.xlane.f32.xlu0 %v771
        %v773 = vpop.xlane.xlu0 %772
        %v774 = vmax.f32 %v770, %v773
        %v775 = vsub.f32 %v770, %v774
        %v776 = vmul.f32 %v775, 1.442695
        %v777 = vpow.pop %v776
        %779 = vset.pattern.permute.xlu0 0
        %780 = vperm.xlu0 %779, %v774
        %v781 = vpop.permute.xlu0 %780
        %v783 = vsub.f32 %v765, %v781
        %v784 = vmul.f32 %v783, 1.442695
        %v785 = vpow.pop %v784
        %v786 = vld [vmem:[#allocation6] sm:$0xff]
        %v787 = vmul.f32 %v777, %v786
        %v788 = vsel %vm723, %v785, 0.0
        %789 = vadd.xlane.f32.xlu0 %v788
        %v790 = vpop.xlane.xlu0 %789
        %v791 = vadd.f32 %v787, %v790
        %vm792 = vcmask 7168
        %793 = vst.msk [vmem:[#allocation6] sm:$0xff] %vm792, %v791
        %v794 = vld [vmem:[#allocation7] sm:$0xff]
        %796 = vset.pattern.permute.xlu0 0
        %797 = vperm.xlu0 %796, %v777
        %v798 = vpop.permute.xlu0 %797
        %v800 = vmul.f32 %v798, %v794
        %v801 = vpack.c.bf16 %v785, %v785
        %v803 = vsel %vm723, %v801, 0
        %vm805 = vcmask 1043456
        %v807 = vsel %vm805, %v722, 0
        %809 = vmatprep.subr.bf16.mxu0 0
        %810 = vmatpush1.bf16.msra.mxu0 %v807
        %811 = vmatprep.subr.bf16.mxu0 0
        %812 = vmatpush1.bf16.msra.mxu0 0
        %813 = vmatprep.subr.bf16.mxu0 0
        %814 = vmatpush1.bf16.msra.mxu0 0
        %815 = vmatprep.subr.bf16.mxu0 0
        %816 = vmatpush1.bf16.msra.mxu0 0
        %817 = vmatprep.subr.bf16.mxu0 0
        %818 = vmatpush1.bf16.msra.mxu0 0
        %819 = vmatprep.subr.bf16.mxu0 0
        %820 = vmatpush1.bf16.msra.mxu0 0
        %821 = vmatprep.subr.bf16.mxu0 0
        %822 = vmatpush1.bf16.msra.mxu0 0
        %823 = vmatprep.subr.bf16.mxu0 0
        %824 = vmatpush1.bf16.msra.mxu0 0
        %825 = vmatprep.subr.bf16.mxu0 0
        %826 = vmatpush1.bf16.msra.mxu0 0
        %827 = vmatprep.subr.bf16.mxu0 0
        %828 = vmatpush1.bf16.msra.mxu0 0
        %829 = vmatprep.subr.bf16.mxu0 0
        %830 = vmatpush1.bf16.msra.mxu0 0
        %831 = vmatprep.subr.bf16.mxu0 0
        %832 = vmatpush1.bf16.msra.mxu0 0
        %833 = vmatprep.subr.bf16.mxu0 0
        %834 = vmatpush1.bf16.msra.mxu0 0
        %835 = vmatprep.subr.bf16.mxu0 0
        %836 = vmatpush1.bf16.msra.mxu0 0
        %837 = vmatprep.subr.bf16.mxu0 0
        %838 = vmatpush1.bf16.msra.mxu0 0
        %839 = vmatprep.subr.bf16.mxu0 0
        %840 = vmatpush1.bf16.msra.mxu0 0
        %841 = vmatprep.mubr.bf16.mxu0 0
        %842 = vmatmul.mubr.bf16.gmra.mrb[0].mxu0 %v803
        %v843 = vpop.f32.mrb[0].mxu0
        %v844 = vadd.f32 0.0, %v843
        %v845 = vpop.f32.mrb[0].mxu0
        %v846 = vpop.f32.mrb[0].mxu0
        %v847 = vpop.f32.mrb[0].mxu0
        %848 = vdwg.mxu0
        %v849 = vadd.f32 %v800, %v844
        %850 = vst.msk [vmem:[#allocation7] sm:$0xff] %vm723, %v849
        %851 = vst.msk [vmem:[#allocation5] sm:$0xff] %vm792, %v774
        %v852 = vld [vmem:[#allocation2] sm:$0xf]
        %v853 = vld [vmem:[#allocation3] sm:$0xf]
        %v854 = vld [vmem:[#allocation4] sm:$0xf]
        %v856 = vunpack.c.l.b16 %v852
        %v857 = vpack.c.b16 %v856, %v856
        %858 = vrot.lane.b32.xlu0 %v857, 120
        %v859 = vpop.permute.xlu0 %858
        %v861 = vunpack.c.l.b16 %v853
        %v862 = vpack.c.b16 %v861, %v861
        %863 = vrot.lane.b32.xlu0 %v862, 120
        %v864 = vpop.permute.xlu0 %863
        %v866 = vsel %vm723, %v859, 0
        %v869 = vsel %vm723, %v864, 0
        %871 = vmatprep.subr.bf16.mxu0 0
        %872 = vmatpush1.bf16.xpose.msra.mxu0 %v869
        %873 = vmatprep.subr.bf16.mxu0 0
        %874 = vmatpush1.bf16.xpose.msra.mxu0 0
        %875 = vmatprep.subr.bf16.mxu0 0
        %876 = vmatpush1.bf16.xpose.msra.mxu0 0
        %877 = vmatprep.subr.bf16.mxu0 0
        %878 = vmatpush1.bf16.xpose.msra.mxu0 0
        %879 = vmatprep.subr.bf16.mxu0 0
        %880 = vmatpush1.bf16.xpose.msra.mxu0 0
        %881 = vmatprep.subr.bf16.mxu0 0
        %882 = vmatpush1.bf16.xpose.msra.mxu0 0
        %883 = vmatprep.subr.bf16.mxu0 0
        %884 = vmatpush1.bf16.xpose.msra.mxu0 0
        %885 = vmatprep.subr.bf16.mxu0 0
        %886 = vmatpush1.bf16.xpose.msra.mxu0 0
        %887 = vmatprep.subr.bf16.mxu0 0
        %888 = vmatpush1.bf16.xpose.msra.mxu0 0
        %889 = vmatprep.subr.bf16.mxu0 0
        %890 = vmatpush1.bf16.xpose.msra.mxu0 0
        %891 = vmatprep.subr.bf16.mxu0 0
        %892 = vmatpush1.bf16.xpose.msra.mxu0 0
        %893 = vmatprep.subr.bf16.mxu0 0
        %894 = vmatpush1.bf16.xpose.msra.mxu0 0
        %895 = vmatprep.subr.bf16.mxu0 0
        %896 = vmatpush1.bf16.xpose.msra.mxu0 0
        %897 = vmatprep.subr.bf16.mxu0 0
        %898 = vmatpush1.bf16.xpose.msra.mxu0 0
        %899 = vmatprep.subr.bf16.mxu0 0
        %900 = vmatpush1.bf16.xpose.msra.mxu0 0
        %901 = vmatprep.subr.bf16.mxu0 0
        %902 = vmatpush1.bf16.xpose.msra.mxu0 0
        %903 = vmatprep.mubr.bf16.mxu0 0
        %904 = vmatmul.mubr.bf16.gmra.mrb[0].mxu0 %v866
        %v905 = vpop.f32.mrb[0].mxu0
        %v906 = vadd.f32 %v719, %v905
        %v907 = vpop.f32.mrb[0].mxu0
        %v908 = vpop.f32.mrb[0].mxu0
        %v909 = vpop.f32.mrb[0].mxu0
        %910 = vdwg.mxu0
        %s911 = scalar_lea.vmem [#allocation5], 8
        %v912 = vld [vmem:[%s911] sm:$0xff]
        %v913 = vsel %vm723, %v906, -inf
        %914 = vmax.xlane.f32.xlu0 %v913
        %v915 = vpop.xlane.xlu0 %914
        %v916 = vmax.f32 %v912, %v915
        %v917 = vsub.f32 %v912, %v916
        %v918 = vmul.f32 %v917, 1.442695
        %v919 = vpow.pop %v918
        %921 = vset.pattern.permute.xlu0 0
        %922 = vperm.xlu0 %921, %v916
        %v923 = vpop.permute.xlu0 %922
        %v925 = vsub.f32 %v906, %v923
        %v926 = vmul.f32 %v925, 1.442695
        %v927 = vpow.pop %v926
        %s928 = scalar_lea.vmem [#allocation6], 8
        %v929 = vld [vmem:[%s928] sm:$0xff]
        %v930 = vmul.f32 %v919, %v929
        %v931 = vsel %vm723, %v927, 0.0
        %932 = vadd.xlane.f32.xlu0 %v931
        %v933 = vpop.xlane.xlu0 %932
        %v934 = vadd.f32 %v930, %v933
        %935 = vst.msk [vmem:[%s928] sm:$0xff] %vm792, %v934
        %s936 = scalar_lea.vmem [#allocation7], 8
        %v937 = vld [vmem:[%s936] sm:$0xff]
        %939 = vset.pattern.permute.xlu0 0
        %940 = vperm.xlu0 %939, %v919
        %v941 = vpop.permute.xlu0 %940
        %v943 = vmul.f32 %v941, %v937
        %v944 = vpack.c.bf16 %v927, %v927
        %v946 = vunpack.c.l.b16 %v854
        %v947 = vpack.c.b16 %v946, %v946
        %948 = vrot.lane.b32.xlu0 %v947, 120
        %v949 = vpop.permute.xlu0 %948
        %v951 = vsel %vm723, %v944, 0
        %v954 = vsel %vm805, %v949, 0
        %956 = vmatprep.subr.bf16.mxu0 0
        %957 = vmatpush1.bf16.msra.mxu0 %v954
        %958 = vmatprep.subr.bf16.mxu0 0
        %959 = vmatpush1.bf16.msra.mxu0 0
        %960 = vmatprep.subr.bf16.mxu0 0
        %961 = vmatpush1.bf16.msra.mxu0 0
        %962 = vmatprep.subr.bf16.mxu0 0
        %963 = vmatpush1.bf16.msra.mxu0 0
        %964 = vmatprep.subr.bf16.mxu0 0
        %965 = vmatpush1.bf16.msra.mxu0 0
        %966 = vmatprep.subr.bf16.mxu0 0
        %967 = vmatpush1.bf16.msra.mxu0 0
        %968 = vmatprep.subr.bf16.mxu0 0
        %969 = vmatpush1.bf16.msra.mxu0 0
        %970 = vmatprep.subr.bf16.mxu0 0
        %971 = vmatpush1.bf16.msra.mxu0 0
        %972 = vmatprep.subr.bf16.mxu0 0
        %973 = vmatpush1.bf16.msra.mxu0 0
        %974 = vmatprep.subr.bf16.mxu0 0
        %975 = vmatpush1.bf16.msra.mxu0 0
        %976 = vmatprep.subr.bf16.mxu0 0
        %977 = vmatpush1.bf16.msra.mxu0 0
        %978 = vmatprep.subr.bf16.mxu0 0
        %979 = vmatpush1.bf16.msra.mxu0 0
        %980 = vmatprep.subr.bf16.mxu0 0
        %981 = vmatpush1.bf16.msra.mxu0 0
        %982 = vmatprep.subr.bf16.mxu0 0
        %983 = vmatpush1.bf16.msra.mxu0 0
        %984 = vmatprep.subr.bf16.mxu0 0
        %985 = vmatpush1.bf16.msra.mxu0 0
        %986 = vmatprep.subr.bf16.mxu0 0
        %987 = vmatpush1.bf16.msra.mxu0 0
        %988 = vmatprep.mubr.bf16.mxu0 0
        %989 = vmatmul.mubr.bf16.gmra.mrb[0].mxu0 %v951
        %v990 = vpop.f32.mrb[0].mxu0
        %v991 = vadd.f32 0.0, %v990
        %v992 = vpop.f32.mrb[0].mxu0
        %v993 = vpop.f32.mrb[0].mxu0
        %v994 = vpop.f32.mrb[0].mxu0
        %995 = vdwg.mxu0
        %v996 = vadd.f32 %v943, %v991
        %997 = vst.msk [vmem:[%s936] sm:$0xff] %vm723, %v996
        %998 = vst.msk [vmem:[%s911] sm:$0xff] %vm792, %v916
        %v999 = vld [vmem:[#allocation2] sm:$0xf]
        %v1000 = vld [vmem:[#allocation3] sm:$0xf]
        %v1001 = vld [vmem:[#allocation4] sm:$0xf]
        %v1003 = vunpack.c.l.b16 %v999
        %v1004 = vpack.c.b16 %v1003, %v1003
        %1005 = vrot.lane.b32.xlu0 %v1004, 112
        %v1006 = vpop.permute.xlu0 %1005
        %v1008 = vunpack.c.l.b16 %v1000
        %v1009 = vpack.c.b16 %v1008, %v1008
        %1010 = vrot.lane.b32.xlu0 %v1009, 112
        %v1011 = vpop.permute.xlu0 %1010
        %v1013 = vsel %vm723, %v1006, 0
        %v1016 = vsel %vm723, %v1011, 0
        %1018 = vmatprep.subr.bf16.mxu0 0
        %1019 = vmatpush1.bf16.xpose.msra.mxu0 %v1016
        %1020 = vmatprep.subr.bf16.mxu0 0
        %1021 = vmatpush1.bf16.xpose.msra.mxu0 0
        %1022 = vmatprep.subr.bf16.mxu0 0
        %1023 = vmatpush1.bf16.xpose.msra.mxu0 0
        %1024 = vmatprep.subr.bf16.mxu0 0
        %1025 = vmatpush1.bf16.xpose.msra.mxu0 0
        %1026 = vmatprep.subr.bf16.mxu0 0
        %1027 = vmatpush1.bf16.xpose.msra.mxu0 0
        %1028 = vmatprep.subr.bf16.mxu0 0
        %1029 = vmatpush1.bf16.xpose.msra.mxu0 0
        %1030 = vmatprep.subr.bf16.mxu0 0
        %1031 = vmatpush1.bf16.xpose.msra.mxu0 0
        %1032 = vmatprep.subr.bf16.mxu0 0
        %1033 = vmatpush1.bf16.xpose.msra.mxu0 0
        %1034 = vmatprep.subr.bf16.mxu0 0
        %1035 = vmatpush1.bf16.xpose.msra.mxu0 0
        %1036 = vmatprep.subr.bf16.mxu0 0
        %1037 = vmatpush1.bf16.xpose.msra.mxu0 0
        %1038 = vmatprep.subr.bf16.mxu0 0
        %1039 = vmatpush1.bf16.xpose.msra.mxu0 0
        %1040 = vmatprep.subr.bf16.mxu0 0
        %1041 = vmatpush1.bf16.xpose.msra.mxu0 0
        %1042 = vmatprep.subr.bf16.mxu0 0
        %1043 = vmatpush1.bf16.xpose.msra.mxu0 0
        %1044 = vmatprep.subr.bf16.mxu0 0
        %1045 = vmatpush1.bf16.xpose.msra.mxu0 0
        %1046 = vmatprep.subr.bf16.mxu0 0
        %1047 = vmatpush1.bf16.xpose.msra.mxu0 0
        %1048 = vmatprep.subr.bf16.mxu0 0
        %1049 = vmatpush1.bf16.xpose.msra.mxu0 0
        %1050 = vmatprep.mubr.bf16.mxu0 0
        %1051 = vmatmul.mubr.bf16.gmra.mrb[0].mxu0 %v1013
        %v1052 = vpop.f32.mrb[0].mxu0
        %v1053 = vadd.f32 %v719, %v1052
        %v1054 = vpop.f32.mrb[0].mxu0
        %v1055 = vpop.f32.mrb[0].mxu0
        %v1056 = vpop.f32.mrb[0].mxu0
        %1057 = vdwg.mxu0
        %s1058 = scalar_lea.vmem [#allocation5], 16
        %v1059 = vld [vmem:[%s1058] sm:$0xff]
        %v1060 = vsel %vm723, %v1053, -inf
        %1061 = vmax.xlane.f32.xlu0 %v1060
        %v1062 = vpop.xlane.xlu0 %1061
        %v1063 = vmax.f32 %v1059, %v1062
        %v1064 = vsub.f32 %v1059, %v1063
        %v1065 = vmul.f32 %v1064, 1.442695
        %v1066 = vpow.pop %v1065
        %1068 = vset.pattern.permute.xlu0 0
        %1069 = vperm.xlu0 %1068, %v1063
        %v1070 = vpop.permute.xlu0 %1069
        %v1072 = vsub.f32 %v1053, %v1070
        %v1073 = vmul.f32 %v1072, 1.442695
        %v1074 = vpow.pop %v1073
        %s1075 = scalar_lea.vmem [#allocation6], 16
        %v1076 = vld [vmem:[%s1075] sm:$0xff]
        %v1077 = vmul.f32 %v1066, %v1076
        %v1078 = vsel %vm723, %v1074, 0.0
        %1079 = vadd.xlane.f32.xlu0 %v1078
        %v1080 = vpop.xlane.xlu0 %1079
        %v1081 = vadd.f32 %v1077, %v1080
        %1082 = vst.msk [vmem:[%s1075] sm:$0xff] %vm792, %v1081
        %s1083 = scalar_lea.vmem [#allocation7], 16
        %v1084 = vld [vmem:[%s1083] sm:$0xff]
        %1086 = vset.pattern.permute.xlu0 0
        %1087 = vperm.xlu0 %1086, %v1066
        %v1088 = vpop.permute.xlu0 %1087
        %v1090 = vmul.f32 %v1088, %v1084
        %v1091 = vpack.c.bf16 %v1074, %v1074
        %v1093 = vunpack.c.l.b16 %v1001
        %v1094 = vpack.c.b16 %v1093, %v1093
        %1095 = vrot.lane.b32.xlu0 %v1094, 112
        %v1096 = vpop.permute.xlu0 %1095
        %v1098 = vsel %vm723, %v1091, 0
        %v1101 = vsel %vm805, %v1096, 0
        %1103 = vmatprep.subr.bf16.mxu0 0
        %1104 = vmatpush1.bf16.msra.mxu0 %v1101
        %1105 = vmatprep.subr.bf16.mxu0 0
        %1106 = vmatpush1.bf16.msra.mxu0 0
        %1107 = vmatprep.subr.bf16.mxu0 0
        %1108 = vmatpush1.bf16.msra.mxu0 0
        %1109 = vmatprep.subr.bf16.mxu0 0
        %1110 = vmatpush1.bf16.msra.mxu0 0
        %1111 = vmatprep.subr.bf16.mxu0 0
        %1112 = vmatpush1.bf16.msra.mxu0 0
        %1113 = vmatprep.subr.bf16.mxu0 0
        %1114 = vmatpush1.bf16.msra.mxu0 0
        %1115 = vmatprep.subr.bf16.mxu0 0
        %1116 = vmatpush1.bf16.msra.mxu0 0
        %1117 = vmatprep.subr.bf16.mxu0 0
        %1118 = vmatpush1.bf16.msra.mxu0 0
        %1119 = vmatprep.subr.bf16.mxu0 0
        %1120 = vmatpush1.bf16.msra.mxu0 0
        %1121 = vmatprep.subr.bf16.mxu0 0
        %1122 = vmatpush1.bf16.msra.mxu0 0
        %1123 = vmatprep.subr.bf16.mxu0 0
        %1124 = vmatpush1.bf16.msra.mxu0 0
        %1125 = vmatprep.subr.bf16.mxu0 0
        %1126 = vmatpush1.bf16.msra.mxu0 0
        %1127 = vmatprep.subr.bf16.mxu0 0
        %1128 = vmatpush1.bf16.msra.mxu0 0
        %1129 = vmatprep.subr.bf16.mxu0 0
        %1130 = vmatpush1.bf16.msra.mxu0 0
        %1131 = vmatprep.subr.bf16.mxu0 0
        %1132 = vmatpush1.bf16.msra.mxu0 0
        %1133 = vmatprep.subr.bf16.mxu0 0
        %1134 = vmatpush1.bf16.msra.mxu0 0
        %1135 = vmatprep.mubr.bf16.mxu0 0
        %1136 = vmatmul.mubr.bf16.gmra.mrb[0].mxu0 %v1098
        %v1137 = vpop.f32.mrb[0].mxu0
        %v1138 = vadd.f32 0.0, %v1137
        %v1139 = vpop.f32.mrb[0].mxu0
        %v1140 = vpop.f32.mrb[0].mxu0
        %v1141 = vpop.f32.mrb[0].mxu0
        %1142 = vdwg.mxu0
        %v1143 = vadd.f32 %v1090, %v1138
        %1144 = vst.msk [vmem:[%s1083] sm:$0xff] %vm723, %v1143
        %1145 = vst.msk [vmem:[%s1058] sm:$0xff] %vm792, %v1063
        %v1146 = vld [vmem:[#allocation2] sm:$0xf]
        %v1147 = vld [vmem:[#allocation3] sm:$0xf]
        %v1148 = vld [vmem:[#allocation4] sm:$0xf]
        %v1150 = vunpack.c.l.b16 %v1146
        %v1151 = vpack.c.b16 %v1150, %v1150
        %1152 = vrot.lane.b32.xlu0 %v1151, 104
        %v1153 = vpop.permute.xlu0 %1152
        %v1155 = vunpack.c.l.b16 %v1147
        %v1156 = vpack.c.b16 %v1155, %v1155
        %1157 = vrot.lane.b32.xlu0 %v1156, 104
        %v1158 = vpop.permute.xlu0 %1157
        %v1160 = vsel %vm723, %v1153, 0
        %v1163 = vsel %vm723, %v1158, 0
        %1165 = vmatprep.subr.bf16.mxu0 0
        %1166 = vmatpush1.bf16.xpose.msra.mxu0 %v1163
        %1167 = vmatprep.subr.bf16.mxu0 0
        %1168 = vmatpush1.bf16.xpose.msra.mxu0 0
        %1169 = vmatprep.subr.bf16.mxu0 0
        %1170 = vmatpush1.bf16.xpose.msra.mxu0 0
        %1171 = vmatprep.subr.bf16.mxu0 0
        %1172 = vmatpush1.bf16.xpose.msra.mxu0 0
        %1173 = vmatprep.subr.bf16.mxu0 0
        %1174 = vmatpush1.bf16.xpose.msra.mxu0 0
        %1175 = vmatprep.subr.bf16.mxu0 0
        %1176 = vmatpush1.bf16.xpose.msra.mxu0 0
        %1177 = vmatprep.subr.bf16.mxu0 0
        %1178 = vmatpush1.bf16.xpose.msra.mxu0 0
        %1179 = vmatprep.subr.bf16.mxu0 0
        %1180 = vmatpush1.bf16.xpose.msra.mxu0 0
        %1181 = vmatprep.subr.bf16.mxu0 0
        %1182 = vmatpush1.bf16.xpose.msra.mxu0 0
        %1183 = vmatprep.subr.bf16.mxu0 0
        %1184 = vmatpush1.bf16.xpose.msra.mxu0 0
        %1185 = vmatprep.subr.bf16.mxu0 0
        %1186 = vmatpush1.bf16.xpose.msra.mxu0 0
        %1187 = vmatprep.subr.bf16.mxu0 0
        %1188 = vmatpush1.bf16.xpose.msra.mxu0 0
        %1189 = vmatprep.subr.bf16.mxu0 0
        %1190 = vmatpush1.bf16.xpose.msra.mxu0 0
        %1191 = vmatprep.subr.bf16.mxu0 0
        %1192 = vmatpush1.bf16.xpose.msra.mxu0 0
        %1193 = vmatprep.subr.bf16.mxu0 0
        %1194 = vmatpush1.bf16.xpose.msra.mxu0 0
        %1195 = vmatprep.subr.bf16.mxu0 0
        %1196 = vmatpush1.bf16.xpose.msra.mxu0 0
        %1197 = vmatprep.mubr.bf16.mxu0 0
        %1198 = vmatmul.mubr.bf16.gmra.mrb[0].mxu0 %v1160
        %v1199 = vpop.f32.mrb[0].mxu0
        %v1200 = vadd.f32 %v719, %v1199
        %v1201 = vpop.f32.mrb[0].mxu0
        %v1202 = vpop.f32.mrb[0].mxu0
        %v1203 = vpop.f32.mrb[0].mxu0
        %1204 = vdwg.mxu0
        %s1205 = scalar_lea.vmem [#allocation5], 24
        %v1206 = vld [vmem:[%s1205] sm:$0xff]
        %v1207 = vsel %vm723, %v1200, -inf
        %1208 = vmax.xlane.f32.xlu0 %v1207
        %v1209 = vpop.xlane.xlu0 %1208
        %v1210 = vmax.f32 %v1206, %v1209
        %v1211 = vsub.f32 %v1206, %v1210
        %v1212 = vmul.f32 %v1211, 1.442695
        %v1213 = vpow.pop %v1212
        %1215 = vset.pattern.permute.xlu0 0
        %1216 = vperm.xlu0 %1215, %v1210
        %v1217 = vpop.permute.xlu0 %1216
        %v1219 = vsub.f32 %v1200, %v1217
        %v1220 = vmul.f32 %v1219, 1.442695
        %v1221 = vpow.pop %v1220
        %s1222 = scalar_lea.vmem [#allocation6], 24
        %v1223 = vld [vmem:[%s1222] sm:$0xff]
        %v1224 = vmul.f32 %v1213, %v1223
        %v1225 = vsel %vm723, %v1221, 0.0
        %1226 = vadd.xlane.f32.xlu0 %v1225
        %v1227 = vpop.xlane.xlu0 %1226
        %v1228 = vadd.f32 %v1224, %v1227
        %1229 = vst.msk [vmem:[%s1222] sm:$0xff] %vm792, %v1228
        %s1230 = scalar_lea.vmem [#allocation7], 24
        %v1231 = vld [vmem:[%s1230] sm:$0xff]
        %1233 = vset.pattern.permute.xlu0 0
        %1234 = vperm.xlu0 %1233, %v1213
        %v1235 = vpop.permute.xlu0 %1234
        %v1237 = vmul.f32 %v1235, %v1231
        %v1238 = vpack.c.bf16 %v1221, %v1221
        %v1240 = vunpack.c.l.b16 %v1148
        %v1241 = vpack.c.b16 %v1240, %v1240
        %1242 = vrot.lane.b32.xlu0 %v1241, 104
        %v1243 = vpop.permute.xlu0 %1242
        %v1245 = vsel %vm723, %v1238, 0
        %v1248 = vsel %vm805, %v1243, 0
        %1250 = vmatprep.subr.bf16.mxu0 0
        %1251 = vmatpush1.bf16.msra.mxu0 %v1248
        %1252 = vmatprep.subr.bf16.mxu0 0
        %1253 = vmatpush1.bf16.msra.mxu0 0
        %1254 = vmatprep.subr.bf16.mxu0 0
        %1255 = vmatpush1.bf16.msra.mxu0 0
        %1256 = vmatprep.subr.bf16.mxu0 0
        %1257 = vmatpush1.bf16.msra.mxu0 0
        %1258 = vmatprep.subr.bf16.mxu0 0
        %1259 = vmatpush1.bf16.msra.mxu0 0
        %1260 = vmatprep.subr.bf16.mxu0 0
        %1261 = vmatpush1.bf16.msra.mxu0 0
        %1262 = vmatprep.subr.bf16.mxu0 0
        %1263 = vmatpush1.bf16.msra.mxu0 0
        %1264 = vmatprep.subr.bf16.mxu0 0
        %1265 = vmatpush1.bf16.msra.mxu0 0
        %1266 = vmatprep.subr.bf16.mxu0 0
        %1267 = vmatpush1.bf16.msra.mxu0 0
        %1268 = vmatprep.subr.bf16.mxu0 0
        %1269 = vmatpush1.bf16.msra.mxu0 0
        %1270 = vmatprep.subr.bf16.mxu0 0
        %1271 = vmatpush1.bf16.msra.mxu0 0
        %1272 = vmatprep.subr.bf16.mxu0 0
        %1273 = vmatpush1.bf16.msra.mxu0 0
        %1274 = vmatprep.subr.bf16.mxu0 0
        %1275 = vmatpush1.bf16.msra.mxu0 0
        %1276 = vmatprep.subr.bf16.mxu0 0
        %1277 = vmatpush1.bf16.msra.mxu0 0
        %1278 = vmatprep.subr.bf16.mxu0 0
        %1279 = vmatpush1.bf16.msra.mxu0 0
        %1280 = vmatprep.subr.bf16.mxu0 0
        %1281 = vmatpush1.bf16.msra.mxu0 0
        %1282 = vmatprep.mubr.bf16.mxu0 0
        %1283 = vmatmul.mubr.bf16.gmra.mrb[0].mxu0 %v1245
        %v1284 = vpop.f32.mrb[0].mxu0
        %v1285 = vadd.f32 0.0, %v1284
        %v1286 = vpop.f32.mrb[0].mxu0
        %v1287 = vpop.f32.mrb[0].mxu0
        %v1288 = vpop.f32.mrb[0].mxu0
        %1289 = vdwg.mxu0
        %v1290 = vadd.f32 %v1237, %v1285
        %1291 = vst.msk [vmem:[%s1230] sm:$0xff] %vm723, %v1290
        %1292 = vst.msk [vmem:[%s1205] sm:$0xff] %vm792, %v1210
        // Predicated region
        $region85: #{tpu_custom_call.1} parent=51 // pred_check
          %p1293 = pneg %p509
        $region86: #{tpu_custom_call.1} parent=51 // pred_check_branch
          %1295 = sbr.rel (%p1293) target = $region88
        $region87: #{tpu_custom_call.1} parent=51 // pred_region
          %v1296 = vld [vmem:[#allocation6] sm:$0xff]
          %v1297 = vld [vmem:[#allocation6 + $0x8] sm:$0xff]
          %v1298 = vld [vmem:[#allocation6 + $0x10] sm:$0xff]
          %v1299 = vld [vmem:[#allocation6 + $0x18] sm:$0xff]
          %v1300 = vrcp.pop %v1296
          %v1301 = vrcp.pop %v1297
          %v1302 = vrcp.pop %v1298
          %v1303 = vrcp.pop %v1299
          %v1304 = vld [vmem:[#allocation7] sm:$0xff]
          %v1305 = vld [vmem:[#allocation7 + $0x8] sm:$0xff]
          %v1306 = vld [vmem:[#allocation7 + $0x10] sm:$0xff]
          %v1307 = vld [vmem:[#allocation7 + $0x18] sm:$0xff]
          %1309 = vset.pattern.permute.xlu0 0
          %1310 = vperm.xlu0 %1309, %v1300
          %v1311 = vpop.permute.xlu0 %1310
          %1314 = vset.pattern.permute.xlu0 0
          %1315 = vperm.xlu0 %1314, %v1301
          %v1316 = vpop.permute.xlu0 %1315
          %1319 = vset.pattern.permute.xlu0 0
          %1320 = vperm.xlu0 %1319, %v1302
          %v1321 = vpop.permute.xlu0 %1320
          %1324 = vset.pattern.permute.xlu0 0
          %1325 = vperm.xlu0 %1324, %v1303
          %v1326 = vpop.permute.xlu0 %1325
          %v1328 = vmul.f32 %v1304, %v1311
          %v1329 = vmul.f32 %v1305, %v1316
          %v1330 = vmul.f32 %v1306, %v1321
          %v1331 = vmul.f32 %v1307, %v1326
          %v1332 = vpack.c.bf16 %v1328, %v1328
          %v1333 = vpack.c.bf16 %v1329, %v1329
          %v1334 = vpack.c.bf16 %v1330, %v1330
          %v1335 = vpack.c.bf16 %v1331, %v1331
          %v1336 = vld [vmem:[#allocation19] sm:$0xf]
          %s1337 = scalar_lea.vmem [#allocation19], 4
          %v1338 = vld [vmem:[%s1337] sm:$0xf]
          %v1340 = vsel %vm723, %v1333, 0
          %v1343 = vsel %vm805, %v1338, 0
          %1345 = vmatprep.subr.bf16.mxu0 0
          %1346 = vmatpush1.bf16.msra.mxu0 %v1343
          %1347 = vmatprep.subr.bf16.mxu0 0
          %1348 = vmatpush1.bf16.msra.mxu0 0
          %1349 = vmatprep.subr.bf16.mxu0 0
          %1350 = vmatpush1.bf16.msra.mxu0 0
          %1351 = vmatprep.subr.bf16.mxu0 0
          %1352 = vmatpush1.bf16.msra.mxu0 0
          %1353 = vmatprep.subr.bf16.mxu0 0
          %1354 = vmatpush1.bf16.msra.mxu0 0
          %1355 = vmatprep.subr.bf16.mxu0 0
          %1356 = vmatpush1.bf16.msra.mxu0 0
          %1357 = vmatprep.subr.bf16.mxu0 0
          %1358 = vmatpush1.bf16.msra.mxu0 0
          %1359 = vmatprep.subr.bf16.mxu0 0
          %1360 = vmatpush1.bf16.msra.mxu0 0
          %1361 = vmatprep.subr.bf16.mxu0 0
          %1362 = vmatpush1.bf16.msra.mxu0 0
          %1363 = vmatprep.subr.bf16.mxu0 0
          %1364 = vmatpush1.bf16.msra.mxu0 0
          %1365 = vmatprep.subr.bf16.mxu0 0
          %1366 = vmatpush1.bf16.msra.mxu0 0
          %1367 = vmatprep.subr.bf16.mxu0 0
          %1368 = vmatpush1.bf16.msra.mxu0 0
          %1369 = vmatprep.subr.bf16.mxu0 0
          %1370 = vmatpush1.bf16.msra.mxu0 0
          %1371 = vmatprep.subr.bf16.mxu0 0
          %1372 = vmatpush1.bf16.msra.mxu0 0
          %1373 = vmatprep.subr.bf16.mxu0 0
          %1374 = vmatpush1.bf16.msra.mxu0 0
          %1375 = vmatprep.subr.bf16.mxu0 0
          %1376 = vmatpush1.bf16.msra.mxu0 0
          %1377 = vmatprep.mubr.bf16.mxu0 0
          %1378 = vmatmul.mubr.bf16.gmra.mrb[0].mxu0 %v1340
          %v1379 = vpop.f32.mrb[0].mxu0
          %v1380 = vadd.f32 0.0, %v1379
          %v1381 = vpop.f32.mrb[0].mxu0
          %v1382 = vpop.f32.mrb[0].mxu0
          %v1383 = vpop.f32.mrb[0].mxu0
          %1384 = vdwg.mxu0
          %v1386 = vsel %vm723, %v1332, 0
          %v1389 = vsel %vm805, %v1336, 0
          %1391 = vmatprep.subr.bf16.mxu0 0
          %1392 = vmatpush1.bf16.msra.mxu0 %v1389
          %1393 = vmatprep.subr.bf16.mxu0 0
          %1394 = vmatpush1.bf16.msra.mxu0 0
          %1395 = vmatprep.subr.bf16.mxu0 0
          %1396 = vmatpush1.bf16.msra.mxu0 0
          %1397 = vmatprep.subr.bf16.mxu0 0
          %1398 = vmatpush1.bf16.msra.mxu0 0
          %1399 = vmatprep.subr.bf16.mxu0 0
          %1400 = vmatpush1.bf16.msra.mxu0 0
          %1401 = vmatprep.subr.bf16.mxu0 0
          %1402 = vmatpush1.bf16.msra.mxu0 0
          %1403 = vmatprep.subr.bf16.mxu0 0
          %1404 = vmatpush1.bf16.msra.mxu0 0
          %1405 = vmatprep.subr.bf16.mxu0 0
          %1406 = vmatpush1.bf16.msra.mxu0 0
          %1407 = vmatprep.subr.bf16.mxu0 0
          %1408 = vmatpush1.bf16.msra.mxu0 0
          %1409 = vmatprep.subr.bf16.mxu0 0
          %1410 = vmatpush1.bf16.msra.mxu0 0
          %1411 = vmatprep.subr.bf16.mxu0 0
          %1412 = vmatpush1.bf16.msra.mxu0 0
          %1413 = vmatprep.subr.bf16.mxu0 0
          %1414 = vmatpush1.bf16.msra.mxu0 0
          %1415 = vmatprep.subr.bf16.mxu0 0
          %1416 = vmatpush1.bf16.msra.mxu0 0
          %1417 = vmatprep.subr.bf16.mxu0 0
          %1418 = vmatpush1.bf16.msra.mxu0 0
          %1419 = vmatprep.subr.bf16.mxu0 0
          %1420 = vmatpush1.bf16.msra.mxu0 0
          %1421 = vmatprep.subr.bf16.mxu0 0
          %1422 = vmatpush1.bf16.msra.mxu0 0
          %1423 = vmatprep.mubr.bf16.mxu0 0
          %1424 = vmatmul.mubr.bf16.gmra.mrb[0].mxu0 %v1386
          %v1425 = vpop.f32.mrb[0].mxu0
          %v1426 = vadd.f32 %v1380, %v1425
          %v1427 = vpop.f32.mrb[0].mxu0
          %v1428 = vpop.f32.mrb[0].mxu0
          %v1429 = vpop.f32.mrb[0].mxu0
          %1430 = vdwg.mxu0
          %s1431 = scalar_lea.vmem [#allocation19], 8
          %v1432 = vld [vmem:[%s1431] sm:$0xf]
          %v1434 = vsel %vm723, %v1334, 0
          %v1437 = vsel %vm805, %v1432, 0
          %1439 = vmatprep.subr.bf16.mxu0 0
          %1440 = vmatpush1.bf16.msra.mxu0 %v1437
          %1441 = vmatprep.subr.bf16.mxu0 0
          %1442 = vmatpush1.bf16.msra.mxu0 0
          %1443 = vmatprep.subr.bf16.mxu0 0
          %1444 = vmatpush1.bf16.msra.mxu0 0
          %1445 = vmatprep.subr.bf16.mxu0 0
          %1446 = vmatpush1.bf16.msra.mxu0 0
          %1447 = vmatprep.subr.bf16.mxu0 0
          %1448 = vmatpush1.bf16.msra.mxu0 0
          %1449 = vmatprep.subr.bf16.mxu0 0
          %1450 = vmatpush1.bf16.msra.mxu0 0
          %1451 = vmatprep.subr.bf16.mxu0 0
          %1452 = vmatpush1.bf16.msra.mxu0 0
          %1453 = vmatprep.subr.bf16.mxu0 0
          %1454 = vmatpush1.bf16.msra.mxu0 0
          %1455 = vmatprep.subr.bf16.mxu0 0
          %1456 = vmatpush1.bf16.msra.mxu0 0
          %1457 = vmatprep.subr.bf16.mxu0 0
          %1458 = vmatpush1.bf16.msra.mxu0 0
          %1459 = vmatprep.subr.bf16.mxu0 0
          %1460 = vmatpush1.bf16.msra.mxu0 0
          %1461 = vmatprep.subr.bf16.mxu0 0
          %1462 = vmatpush1.bf16.msra.mxu0 0
          %1463 = vmatprep.subr.bf16.mxu0 0
          %1464 = vmatpush1.bf16.msra.mxu0 0
          %1465 = vmatprep.subr.bf16.mxu0 0
          %1466 = vmatpush1.bf16.msra.mxu0 0
          %1467 = vmatprep.subr.bf16.mxu0 0
          %1468 = vmatpush1.bf16.msra.mxu0 0
          %1469 = vmatprep.subr.bf16.mxu0 0
          %1470 = vmatpush1.bf16.msra.mxu0 0
          %1471 = vmatprep.mubr.bf16.mxu0 0
          %1472 = vmatmul.mubr.bf16.gmra.mrb[0].mxu0 %v1434
          %v1473 = vpop.f32.mrb[0].mxu0
          %v1474 = vadd.f32 0.0, %v1473
          %v1475 = vpop.f32.mrb[0].mxu0
          %v1476 = vpop.f32.mrb[0].mxu0
          %v1477 = vpop.f32.mrb[0].mxu0
          %1478 = vdwg.mxu0
          %v1479 = vadd.f32 %v1426, %v1474
          %s1480 = scalar_lea.vmem [#allocation19], 12
          %v1481 = vld [vmem:[%s1480] sm:$0xf]
          %v1483 = vsel %vm723, %v1335, 0
          %v1486 = vsel %vm805, %v1481, 0
          %1488 = vmatprep.subr.bf16.mxu0 0
          %1489 = vmatpush1.bf16.msra.mxu0 %v1486
          %1490 = vmatprep.subr.bf16.mxu0 0
          %1491 = vmatpush1.bf16.msra.mxu0 0
          %1492 = vmatprep.subr.bf16.mxu0 0
          %1493 = vmatpush1.bf16.msra.mxu0 0
          %1494 = vmatprep.subr.bf16.mxu0 0
          %1495 = vmatpush1.bf16.msra.mxu0 0
          %1496 = vmatprep.subr.bf16.mxu0 0
          %1497 = vmatpush1.bf16.msra.mxu0 0
          %1498 = vmatprep.subr.bf16.mxu0 0
          %1499 = vmatpush1.bf16.msra.mxu0 0
          %1500 = vmatprep.subr.bf16.mxu0 0
          %1501 = vmatpush1.bf16.msra.mxu0 0
          %1502 = vmatprep.subr.bf16.mxu0 0
          %1503 = vmatpush1.bf16.msra.mxu0 0
          %1504 = vmatprep.subr.bf16.mxu0 0
          %1505 = vmatpush1.bf16.msra.mxu0 0
          %1506 = vmatprep.subr.bf16.mxu0 0
          %1507 = vmatpush1.bf16.msra.mxu0 0
          %1508 = vmatprep.subr.bf16.mxu0 0
          %1509 = vmatpush1.bf16.msra.mxu0 0
          %1510 = vmatprep.subr.bf16.mxu0 0
          %1511 = vmatpush1.bf16.msra.mxu0 0
          %1512 = vmatprep.subr.bf16.mxu0 0
          %1513 = vmatpush1.bf16.msra.mxu0 0
          %1514 = vmatprep.subr.bf16.mxu0 0
          %1515 = vmatpush1.bf16.msra.mxu0 0
          %1516 = vmatprep.subr.bf16.mxu0 0
          %1517 = vmatpush1.bf16.msra.mxu0 0
          %1518 = vmatprep.subr.bf16.mxu0 0
          %1519 = vmatpush1.bf16.msra.mxu0 0
          %1520 = vmatprep.mubr.bf16.mxu0 0
          %1521 = vmatmul.mubr.bf16.gmra.mrb[0].mxu0 %v1483
          %v1522 = vpop.f32.mrb[0].mxu0
          %v1523 = vadd.f32 0.0, %v1522
          %v1524 = vpop.f32.mrb[0].mxu0
          %v1525 = vpop.f32.mrb[0].mxu0
          %v1526 = vpop.f32.mrb[0].mxu0
          %1527 = vdwg.mxu0
          %v1528 = vadd.f32 %v1479, %v1523
          %1529 = vst.msk [vmem:[%s507] sm:$0xff] %vm609, %v1528
        $region88: #{tpu_custom_call.1} parent=51 // pred_fallthru
          _
        %s1530 = sand.u32 %s259, 1
        %s1531 = scalar_lea.sflag [#allocation10], %s1530
        %s1532 = sand.u32 %s259, 1
        %s1533 = smul.addr %s1532, 8
        %s1534 = scalar_lea.vmem [#allocation20], %s1533
        // Predicated region
        $region89: #{tpu_custom_call.1} parent=51 // pred_check
          %p1535 = pneg %p269
        $region90: #{tpu_custom_call.1} parent=51 // pred_check_branch
          %1537 = sbr.rel (%p1535) target = $region92
        $region91: #{tpu_custom_call.1} parent=51 // pred_region
          %s1539 = ssub.s32 128, 128
          %1540 = vsyncadd %s1531, %s1539
          %s1541 = sadd.s32 %s38, %s37
          %s1542 = smul.addr %s1541, 128
          %s1543 = scalar_lea.hbm %s8, %s1542
          %s1545 = sshll.u32 %s1534, 4
          %s1546 = int_to_ptr.vmem [resolvable:$true] %s1545
          %1548 = dma.vmem_to_hbm [thread:$0]  %s1546, 128, %s1543, %s1531
        $region92: #{tpu_custom_call.1} parent=51 // pred_fallthru
          _
      $region52: #{tpu_custom_call.1} parent=5 // pred_fallthru
        _
      %p1549 = scmp.le.s32.totalorder 2, %s27
      // Predicated region
      $region93: #{tpu_custom_call.1} parent=5 // pred_check
        %p1550 = pneg %p1549
      $region94: #{tpu_custom_call.1} parent=5 // pred_check_branch
        %1552 = sbr.rel (%p1550) target = $region96
      $region95: #{tpu_custom_call.1} parent=5 // pred_region
        %s1553 = ssub.s32 %s27, 2
        // Predicated region
        $region97: #{tpu_custom_call.1} parent=95 // pred_check
          %p1554 = pneg %p275
        $region98: #{tpu_custom_call.1} parent=95 // pred_check_branch
          %1556 = sbr.rel (%p1554) target = $region100
        $region99: #{tpu_custom_call.1} parent=95 // pred_region
          %s1557 = sand.u32 %s260, 1
          %s1558 = scalar_lea.sflag [#allocation10], %s1557
          %s1559 = sand.u32 %s260, 1
          %s1560 = smul.addr %s1559, 8
          %s1561 = scalar_lea.vmem [#allocation20], %s1560
          %1562 = dma.done %s1558, 128
        $region100: #{tpu_custom_call.1} parent=95 // pred_fallthru
          _
      $region96: #{tpu_custom_call.1} parent=5 // pred_fallthru
        _
    $region6: #{tpu_custom_call.1} parent=1 // loop_footer
      %s31 = sadd.s32 1, %s27
    $region7: #{tpu_custom_call.1} parent=1 // loop_footer_branch
      %26 = sbr.rel target = $region3
    $region8: #{tpu_custom_call.1} parent=1 // loop_exit
      _
    %1563 = vsyncpa [#allocation9], 1
    %s1564 = scalar_lea.sflag [#allocation9], 1
    %1565 = vsyncpa %s1564, 1
    %1566 = vsyncpa [#allocation12], 1
    %s1567 = scalar_lea.sflag [#allocation12], 1
    %1568 = vsyncpa %s1567, 1
    %1569 = vsyncpa [#allocation15], 1
    %s1570 = scalar_lea.sflag [#allocation15], 1
    %1571 = vsyncpa %s1570, 1
    %1572 = vsyncpa [#allocation18], 1
    %1573 = vsyncpa [#allocation10], 1
    %s1574 = scalar_lea.sflag [#allocation10], 1
    %1575 = vsyncpa %s1574, 1

</llo_original>
